<compile_context>
chip_gen: v7x
topology: tpu7x:2x2x1
jax: 0.10.0
libtpu: 0.0.40
codegen_flags: <defaults>
</compile_context>

<pallas_src>
import dataclasses
import functools

import jax
import jax.numpy as jnp
from jax.experimental import pallas as pl
from jax.experimental.pallas import tpu as pltpu


def _round_up(x, m):
    return ((x + m - 1) // m) * m


# ----------------------------------------------------------------------------
# Per-generation configuration (TC count, MXU-width feature padding, VMEM)
# ----------------------------------------------------------------------------
@dataclasses.dataclass(frozen=True)
class _TpuConfig:
    num_cores: int        # TensorCores sharing the 'parallel' grid axis
    feat_mult: int        # feature-dim padding multiple for hidden layers
    vmem_limit: int       # CompilerParams(vmem_limit_bytes=...)
    vmem_budget: int      # what our own tile accounting is allowed to use


@functools.lru_cache(maxsize=None)
def _tpu_config():
    kind = ""
    try:
        kind = jax.devices()[0].device_kind.lower()
    except Exception:
        pass
    if "7x" in kind or "v7" in kind:
        # 2 TCs/chip, 64 MiB physical VMEM per TC, 2x256x256 MXU.
        return _TpuConfig(num_cores=2, feat_mult=256,
                          vmem_limit=48 << 20, vmem_budget=40 << 20)
    if "v6" in kind:
        # 1 TC, 128 MiB VMEM, 2x256x256 MXU.
        return _TpuConfig(num_cores=1, feat_mult=256,
                          vmem_limit=96 << 20, vmem_budget=80 << 20)
    if "v5" in kind and ("lite" in kind or "5e" in kind):
        # v5e: 1 TC, 128 MiB VMEM, 4x128x128 MXU (128 padding is full width).
        return _TpuConfig(num_cores=1, feat_mult=128,
                          vmem_limit=96 << 20, vmem_budget=80 << 20)
    # Unknown TPU / other generation: conservative defaults.
    return _TpuConfig(num_cores=1, feat_mult=128,
                      vmem_limit=64 << 20, vmem_budget=48 << 20)


def _tile_candidates(n_pad, cfg, cands):
    # Keep >= num_cores row tiles so the 'parallel' axis feeds every TC (v7x).
    out = [t for t in cands if n_pad % t == 0 and t * cfg.num_cores <= n_pad]
    if not out:
        out = [t for t in cands if n_pad % t == 0]
    if not out:
        out = [n_pad]
    return out


# ----------------------------------------------------------------------------
# Kernel 1: feature transform  XW = X @ W  (once per layer), K-tiled over f_in
# ----------------------------------------------------------------------------
def _xw_kernel(x_ref, w_ref, o_ref, acc_ref):
    k = pl.program_id(1)

    @pl.when(k == 0)
    def _():
        acc_ref[...] = jnp.zeros_like(acc_ref)

    acc_ref[...] += jnp.dot(
        x_ref[...], w_ref[...], preferred_element_type=jnp.float32)

    @pl.when(k == pl.num_programs(1) - 1)
    def _():
        o_ref[...] = acc_ref[...].astype(o_ref.dtype)


def _xw_vmem_bytes(tm, tk, f_out_pad):
    x_buf = 2 * tm * tk * 2            # bf16, double-buffered
    w_buf = 2 * tk * f_out_pad * 2     # bf16, double-buffered
    acc = tm * f_out_pad * 4           # f32 scratch
    out = 2 * tm * f_out_pad * 2       # bf16 output, double-buffered
    return x_buf + w_buf + acc + out


def xw_matmul(x, w):
    """x: [n_pad, f_in_pad] bf16, w: [f_in_pad, f_out_pad] bf16 -> bf16."""
    n_pad, f_in_pad = x.shape
    f_out_pad = w.shape[1]
    cfg = _tpu_config()

    tm_cands = _tile_candidates(n_pad, cfg, (1024, 512, 256, 128, 64))
    tk_cands = [t for t in (2048, 1024, 512, 256, 128) if f_in_pad % t == 0]
    if not tk_cands:
        tk_cands = [f_in_pad]

    tm, tk = tm_cands[-1], tk_cands[-1]
    done = False
    for tm_c in tm_cands:               # descending: prefer the largest tiles
        for tk_c in tk_cands:
            if _xw_vmem_bytes(tm_c, tk_c, f_out_pad) <= cfg.vmem_budget:
                tm, tk, done = tm_c, tk_c, True
                break
        if done:
            break

    return pl.pallas_call(
        _xw_kernel,
        out_shape=jax.ShapeDtypeStruct((n_pad, f_out_pad), jnp.bfloat16),
        grid=(n_pad // tm, f_in_pad // tk),
        in_specs=[
            pl.BlockSpec((tm, tk), lambda i, k: (i, k)),
            pl.BlockSpec((tk, f_out_pad), lambda i, k: (k, 0)),
        ],
        out_specs=pl.BlockSpec((tm, f_out_pad), lambda i, k: (i, 0)),
        scratch_shapes=[pltpu.VMEM((tm, f_out_pad), jnp.float32)],
        compiler_params=pltpu.CompilerParams(
            dimension_semantics=("parallel", "arbitrary"),
            vmem_limit_bytes=cfg.vmem_limit),
    )(x, w)


# ----------------------------------------------------------------------------
# Kernel 2: propagation  Y = act( A_hat @ XW + b )
#   grid = (row tiles [parallel], reduction tiles over A_hat cols [arbitrary])
#   XW is kept fully VMEM-resident when it fits the budget (fetched once).
# ----------------------------------------------------------------------------
def _propagate_kernel(a_ref, xw_ref, b_ref, o_ref, acc_ref, *,
                      activation, f_out_valid, xw_resident):
    k = pl.program_id(1)

    @pl.when(k == 0)
    def _():
        acc_ref[...] = jnp.zeros_like(acc_ref)

    tk = a_ref.shape[1]
    if xw_resident:
        start = pl.multiple_of(k * tk, 128)
        xw_blk = xw_ref[pl.ds(start, tk), :]
    else:
        xw_blk = xw_ref[...]
    acc_ref[...] += jnp.dot(a_ref[...], xw_blk,
                            preferred_element_type=jnp.float32)

    @pl.when(k == pl.num_programs(1) - 1)
    def _():
        y = acc_ref[...] + b_ref[...]          # bias broadcast over rows (f32)
        if activation == "relu":
            y = jnp.maximum(y, 0.0)
        elif activation == "log_softmax":
            # mask padded feature columns so they don't corrupt max / lse
            col = jax.lax.broadcasted_iota(jnp.int32, y.shape, 1)
            valid = col < f_out_valid
            ym = jnp.where(valid, y, -jnp.inf)
            m = jnp.max(ym, axis=-1, keepdims=True)
            z = ym - m
            lse = jnp.log(jnp.sum(jnp.exp(z), axis=-1, keepdims=True))
            y = jnp.where(valid, z - lse, 0.0)
        o_ref[...] = y.astype(o_ref.dtype)


def _prop_vmem_bytes(n_pad, f_out_pad, tm, tk, out_itemsize, xw_resident):
    a_buf = 2 * tm * tk * 2                        # bf16 A tile, double-buffered
    xw_rows = n_pad if xw_resident else tk
    xw_buf = 2 * xw_rows * f_out_pad * 2           # bf16 (conservative: x2 bufs)
    bias_buf = 2 * f_out_pad * 4
    acc_buf = tm * f_out_pad * 4                   # f32 scratch
    out_buf = 2 * tm * f_out_pad * out_itemsize
    return a_buf + xw_buf + bias_buf + acc_buf + out_buf


def propagate(a_hat, xw, b, *, activation, f_out_valid, out_dtype):
    """a_hat: [n_pad, n_pad] bf16, xw: [n_pad, f_out_pad] bf16,
       b: [1, f_out_pad] f32."""
    n_pad = a_hat.shape[0]
    f_out_pad = xw.shape[1]
    cfg = _tpu_config()
    out_itemsize = jnp.dtype(out_dtype).itemsize

    tm_cands = _tile_candidates(n_pad, cfg, (1024, 512, 256, 128, 64))
    tk_cands = [t for t in (2048, 1024, 512, 256, 128) if n_pad % t == 0]
    if not tk_cands:
        tk_cands = [n_pad]

    # Prefer a fully VMEM-resident XW (fetched once per layer); fall back to the
    # k-tiled streaming spec only when the per-generation budget doesn't allow.
    choice = None
    for xw_resident in (True, False):
        for tm_c in tm_cands:
            for tk_c in tk_cands:
                if _prop_vmem_bytes(n_pad, f_out_pad, tm_c, tk_c,
                                    out_itemsize, xw_resident) <= cfg.vmem_budget:
                    choice = (tm_c, tk_c, xw_resident)
                    break
            if choice is not None:
                break
        if choice is not None:
            break
    if choice is None:
        choice = (tm_cands[-1], tk_cands[-1], False)
    tm, tk, xw_resident = choice

    if xw_resident:
        xw_spec = pl.BlockSpec((n_pad, f_out_pad), lambda i, k: (0, 0))
    else:
        xw_spec = pl.BlockSpec((tk, f_out_pad), lambda i, k: (k, 0))

    kernel = functools.partial(
        _propagate_kernel, activation=activation, f_out_valid=f_out_valid,
        xw_resident=xw_resident)

    return pl.pallas_call(
        kernel,
        out_shape=jax.ShapeDtypeStruct((n_pad, f_out_pad), out_dtype),
        grid=(n_pad // tm, n_pad // tk),
        in_specs=[
            pl.BlockSpec((tm, tk), lambda i, k: (i, k)),       # A_hat tile
            xw_spec,                                           # XW (resident)
            pl.BlockSpec((1, f_out_pad), lambda i, k: (0, 0)),  # bias
        ],
        out_specs=pl.BlockSpec((tm, f_out_pad), lambda i, k: (i, 0)),
        scratch_shapes=[pltpu.VMEM((tm, f_out_pad), jnp.float32)],
        compiler_params=pltpu.CompilerParams(
            dimension_semantics=("parallel", "arbitrary"),
            vmem_limit_bytes=cfg.vmem_limit),
    )(a_hat, xw, b)


# ----------------------------------------------------------------------------
# Plain-JAX glue: symmetric-normalized adjacency with self-loops
# (PyG GCNConv gcn_norm: A_hat = D^{-1/2} (A + I) D^{-1/2}); built ONCE per
# graph (hoisted out of the per-forward path) and cached by the caller.
# ----------------------------------------------------------------------------
def build_norm_adj(edge_index, edge_weight, num_nodes):
    src = edge_index[0]
    dst = edge_index[1]
    if edge_weight is None:
        edge_weight = jnp.ones(src.shape[0], dtype=jnp.float32)
    a = jnp.zeros((num_nodes, num_nodes), dtype=jnp.float32)
    a = a.at[dst, src].add(edge_weight)            # message flows src -> dst
    diag = jnp.arange(num_nodes)
    a = a.at[diag, diag].add(1.0)                  # self-loops, in-place diag add
    deg = jnp.sum(a, axis=1)
    d_inv_sqrt = jnp.where(deg > 0.0, jax.lax.rsqrt(deg), 0.0)
    return d_inv_sqrt[:, None] * a * d_inv_sqrt[None, :]


def precompute_norm_adj(edge_index, edge_weight, num_nodes):
    """Build, normalize, pad and bf16-cast A_hat once per graph."""
    n_pad = _round_up(num_nodes, 128)
    a = build_norm_adj(edge_index, edge_weight, num_nodes)
    a = jnp.pad(a, ((0, n_pad - num_nodes), (0, n_pad - num_nodes)))
    return a.astype(jnp.bfloat16)


# ----------------------------------------------------------------------------
# GCN model (parameters + forward)
# ----------------------------------------------------------------------------
def init_gcn_params(key, in_channels, hidden_channels, out_channels, num_layers):
    dims = [in_channels] + [hidden_channels] * (num_layers - 1) + [out_channels]
    params = []
    for li in range(num_layers):
        f_in, f_out = dims[li], dims[li + 1]
        key, wk = jax.random.split(key)
        bound = (6.0 / (f_in + f_out)) ** 0.5      # glorot-uniform, zero bias
        w = jax.random.uniform(wk, (f_in, f_out), jnp.float32, -bound, bound)
        b = jnp.zeros((f_out,), jnp.float32)
        params.append((w, b))
    return params


def gcn_forward(params, x, edge_index=None, edge_weight=None, dropout=0.5,
                training=False, a_hat_pad=None):
    """If `a_hat_pad` (precomputed via precompute_norm_adj) is given, the
    per-forward path touches A_hat only inside the Pallas kernels."""
    n, f_in0 = x.shape
    if a_hat_pad is None:
        a_hat_pad = precompute_norm_adj(edge_index, edge_weight, n)
    n_pad = a_hat_pad.shape[0]

    cfg = _tpu_config()
    f_in_pad0 = _round_up(f_in0, 128)
    h = jnp.pad(x, ((0, n_pad - n), (0, f_in_pad0 - f_in0))).astype(jnp.bfloat16)

    num_layers = len(params)
    f_out = None
    for li, (w, b) in enumerate(params):
        f_in, f_out = w.shape
        last = li == num_layers - 1
        # MXU-width-aware feature padding: 256-multiples for hidden layers on
        # v6e/v7x (2x256x256 MXU); 128 on v5e and for the small class layer.
        mult = 128 if last else cfg.feat_mult
        f_in_pad = h.shape[1]                      # match current activations
        f_out_pad = _round_up(f_out, mult)
        w_pad = (jnp.zeros((f_in_pad, f_out_pad), jnp.float32)
                 .at[:f_in, :f_out].set(w).astype(jnp.bfloat16))
        b_pad = jnp.zeros((1, f_out_pad), jnp.float32).at[0, :f_out].set(b)

        xw = xw_matmul(h, w_pad)                   # [n_pad, f_out_pad] bf16
        h = propagate(
            a_hat_pad, xw, b_pad,
            activation="log_softmax" if last else "relu",
            f_out_valid=f_out,
            out_dtype=jnp.float32 if last else jnp.bfloat16)
        # dropout: eval-mode identity (F.dropout with training=False).
        # TODO(synk): training-mode dropout via pltpu.prng_random_bits.

    return h[:n, :f_out]


# ----------------------------------------------------------------------------
# Pure-JAX reference (f32) for correctness check
# ----------------------------------------------------------------------------
def gcn_reference(params, x, edge_index, edge_weight=None):
    a = build_norm_adj(edge_index, edge_weight, x.shape[0])
    h = x
    for w, b in params[:-1]:
        h = jnp.maximum(a @ (h @ w) + b, 0.0)
    w, b = params[-1]
    logits = a @ (h @ w) + b
    return jax.nn.log_softmax(logits, axis=-1)


# ----------------------------------------------------------------------------
# Demo
# ----------------------------------------------------------------------------
if __name__ == "__main__":
    key = jax.random.PRNGKey(0)

    num_nodes = 64
    num_edges = 256
    in_channels = 16
    hidden_channels = 32
    out_channels = 8
    num_layers = 3
    dropout = 0.5

    k_x, k_src, k_dst, k_params = jax.random.split(key, 4)
    x = jax.random.normal(k_x, (num_nodes, in_channels), dtype=jnp.float32)
    src = jax.random.randint(k_src, (num_edges,), 0, num_nodes, dtype=jnp.int32)
    dst = jax.random.randint(k_dst, (num_edges,), 0, num_nodes, dtype=jnp.int32)
    edge_index = jnp.stack([src, dst], axis=0)  # [2, E]

    params = init_gcn_params(k_params, in_channels, hidden_channels,
                             out_channels, num_layers)

    # A_hat is built / normalized / padded / bf16-cast ONCE per graph.
    a_hat_pad = precompute_norm_adj(edge_index, None, num_nodes)
    a_hat_pad = jax.block_until_ready(a_hat_pad)

    fwd = jax.jit(functools.partial(gcn_forward, dropout=dropout,
                                    training=False))
    out = fwd(params, x, a_hat_pad=a_hat_pad)
    out = jax.block_until_ready(out)

    assert out.shape == (num_nodes, out_channels)
    # log_softmax rows should sum (in prob space) to ~1
    assert jnp.allclose(jnp.sum(jnp.exp(out), axis=-1), 1.0, atol=1e-3)
    # matches f32 reference within bf16-induced tolerance
    ref = gcn_reference(params, x, edge_index)
    assert float(jnp.max(jnp.abs(out - ref))) < 0.25

    print("KERNEL_OK")
</pallas_src>

<mosaic_0001>
module attributes {stable_mosaic.version = 11 : i64} {
  func.func @_xw_kernel(%arg0: i32, %arg1: i32, %arg2: memref<128x128xbf16, #tpu.memory_space<vmem>>, %arg3: memref<128x128xbf16, #tpu.memory_space<vmem>>, %arg4: memref<128x128xbf16, #tpu.memory_space<vmem>>, %arg5: memref<128x128xf32, #tpu.memory_space<vmem>>) attributes {dimension_semantics = [#tpu.dimension_semantics<parallel>, #tpu.dimension_semantics<arbitrary>], iteration_bounds = array<i64: 1, 1>, scalar_prefetch = 0 : i64, scratch_operands = 1 : i64, tpu.core_type = #tpu.core_type<tc>, window_params = [{transform_indices = @transform_0, window_bounds = array<i64: 128, 128>}, {transform_indices = @transform_1, window_bounds = array<i64: 128, 128>}, {transform_indices = @transform_2, window_bounds = array<i64: 128, 128>}]} {
    %c0_i32 = arith.constant 0 : i32
    %0 = arith.cmpi eq, %arg1, %c0_i32 : i32
    %1 = arith.extui %0 : i1 to i32
    %c0_i32_0 = arith.constant 0 : i32
    %2 = arith.cmpi ne, %1, %c0_i32_0 : i32
    scf.if %2 {
      %cst_10 = arith.constant 0.000000e+00 : f32
      %12 = vector.broadcast %cst_10 : f32 to vector<128x128xf32>
      %c0_11 = arith.constant 0 : index
      %c0_12 = arith.constant 0 : index
      %13 = vector.load %arg5[%c0_11, %c0_12] : memref<128x128xf32, #tpu.memory_space<vmem>>, vector<128x128xf32>
      tpu.vector_store %arg5[%c0_11, %c0_12], %12 {strides = array<i32>} : memref<128x128xf32, #tpu.memory_space<vmem>>, vector<128x128xf32>,
    } else {
    }
    %c0 = arith.constant 0 : index
    %c0_1 = arith.constant 0 : index
    %3 = vector.load %arg5[%c0, %c0_1] : memref<128x128xf32, #tpu.memory_space<vmem>>, vector<128x128xf32>
    %c0_2 = arith.constant 0 : index
    %c0_3 = arith.constant 0 : index
    %4 = vector.load %arg2[%c0_2, %c0_3] : memref<128x128xbf16, #tpu.memory_space<vmem>>, vector<128x128xbf16>
    %c0_4 = arith.constant 0 : index
    %c0_5 = arith.constant 0 : index
    %5 = vector.load %arg3[%c0_4, %c0_5] : memref<128x128xbf16, #tpu.memory_space<vmem>>, vector<128x128xbf16>
    %cst = arith.constant dense<0.000000e+00> : vector<128x128xf32>
    %6 = tpu.matmul %4, %5, %cst {dimension_numbers = #tpu.dot_dimension_numbers<[1], [0], [0], [1], [0, 0, 1, 1], [], []>} : vector<128x128xbf16>, vector<128x128xbf16>, vector<128x128xf32> -> vector<128x128xf32>
    %7 = arith.addf %3, %6 : vector<128x128xf32>
    %c0_6 = arith.constant 0 : index
    %c0_7 = arith.constant 0 : index
    %8 = vector.load %arg5[%c0_6, %c0_7] : memref<128x128xf32, #tpu.memory_space<vmem>>, vector<128x128xf32>
    tpu.vector_store %arg5[%c0_6, %c0_7], %7 {strides = array<i32>} : memref<128x128xf32, #tpu.memory_space<vmem>>, vector<128x128xf32>,
    %c0_i32_8 = arith.constant 0 : i32
    %9 = arith.cmpi eq, %arg1, %c0_i32_8 : i32
    %10 = arith.extui %9 : i1 to i32
    %c0_i32_9 = arith.constant 0 : i32
    %11 = arith.cmpi ne, %10, %c0_i32_9 : i32
    scf.if %11 {
      %c0_10 = arith.constant 0 : index
      %c0_11 = arith.constant 0 : index
      %12 = vector.load %arg5[%c0_10, %c0_11] : memref<128x128xf32, #tpu.memory_space<vmem>>, vector<128x128xf32>
      %13 = arith.truncf %12 : vector<128x128xf32> to vector<128x128xbf16>
      %c0_12 = arith.constant 0 : index
      %c0_13 = arith.constant 0 : index
      %14 = vector.load %arg4[%c0_12, %c0_13] : memref<128x128xbf16, #tpu.memory_space<vmem>>, vector<128x128xbf16>
      tpu.vector_store %arg4[%c0_12, %c0_13], %13 {strides = array<i32>} : memref<128x128xbf16, #tpu.memory_space<vmem>>, vector<128x128xbf16>,
    } else {
    }
    return
  }
  func.func @transform_0(%arg0: i32, %arg1: i32) -> (i32, i32) {
    %c0_i32 = arith.constant 0 : i32
    return %arg0, %arg1 : i32, i32
  }
  func.func @transform_1(%arg0: i32, %arg1: i32) -> (i32, i32) {
    %c0_i32 = arith.constant 0 : i32
    %c0_i32_0 = arith.constant 0 : i32
    return %arg1, %c0_i32 : i32, i32
  }
  func.func @transform_2(%arg0: i32, %arg1: i32) -> (i32, i32) {
    %c0_i32 = arith.constant 0 : i32
    %c0_i32_0 = arith.constant 0 : i32
    return %arg0, %c0_i32 : i32, i32
  }
}

module attributes {stable_mosaic.version = 11 : i64} {
  func.func @_propagate_kernel(%arg0: i32, %arg1: i32, %arg2: memref<128x128xbf16, #tpu.memory_space<vmem>>, %arg3: memref<128x128xbf16, #tpu.memory_space<vmem>>, %arg4: memref<1x128xf32, #tpu.memory_space<vmem>>, %arg5: memref<128x128xbf16, #tpu.memory_space<vmem>>, %arg6: memref<128x128xf32, #tpu.memory_space<vmem>>) attributes {dimension_semantics = [#tpu.dimension_semantics<parallel>, #tpu.dimension_semantics<arbitrary>], iteration_bounds = array<i64: 1, 1>, scalar_prefetch = 0 : i64, scratch_operands = 1 : i64, tpu.core_type = #tpu.core_type<tc>, window_params = [{transform_indices = @transform_0, window_bounds = array<i64: 128, 128>}, {pipeline_mode = #tpu.pipeline_mode<synchronous>, transform_indices = @transform_1, window_bounds = array<i64: 128, 128>}, {pipeline_mode = #tpu.pipeline_mode<synchronous>, transform_indices = @transform_2, window_bounds = array<i64: 1, 128>}, {transform_indices = @transform_3, window_bounds = array<i64: 128, 128>}]} {
    %c0_i32 = arith.constant 0 : i32
    %0 = arith.cmpi eq, %arg1, %c0_i32 : i32
    %1 = arith.extui %0 : i1 to i32
    %c0_i32_0 = arith.constant 0 : i32
    %2 = arith.cmpi ne, %1, %c0_i32_0 : i32
    scf.if %2 {
      %cst_9 = arith.constant 0.000000e+00 : f32
      %15 = vector.broadcast %cst_9 : f32 to vector<128x128xf32>
      %c0_10 = arith.constant 0 : index
      %c0_11 = arith.constant 0 : index
      %16 = vector.load %arg6[%c0_10, %c0_11] : memref<128x128xf32, #tpu.memory_space<vmem>>, vector<128x128xf32>
      tpu.vector_store %arg6[%c0_10, %c0_11], %15 {strides = array<i32>} : memref<128x128xf32, #tpu.memory_space<vmem>>, vector<128x128xf32>,
    } else {
    }
    %c128_i32 = arith.constant 128 : i32
    %3 = arith.muli %arg1, %c128_i32 : i32
    %4 = tpu.assume_multiple %3, 128 : i32
    %5 = arith.index_cast %4 : i32 to index
    %c0 = arith.constant 0 : index
    %6 = vector.load %arg3[%5, %c0] : memref<128x128xbf16, #tpu.memory_space<vmem>>, vector<128x128xbf16>
    %c0_1 = arith.constant 0 : index
    %c0_2 = arith.constant 0 : index
    %7 = vector.load %arg6[%c0_1, %c0_2] : memref<128x128xf32, #tpu.memory_space<vmem>>, vector<128x128xf32>
    %c0_3 = arith.constant 0 : index
    %c0_4 = arith.constant 0 : index
    %8 = vector.load %arg2[%c0_3, %c0_4] : memref<128x128xbf16, #tpu.memory_space<vmem>>, vector<128x128xbf16>
    %cst = arith.constant dense<0.000000e+00> : vector<128x128xf32>
    %9 = tpu.matmul %8, %6, %cst {dimension_numbers = #tpu.dot_dimension_numbers<[1], [0], [0], [1], [0, 0, 1, 1], [], []>} : vector<128x128xbf16>, vector<128x128xbf16>, vector<128x128xf32> -> vector<128x128xf32>
    %10 = arith.addf %7, %9 : vector<128x128xf32>
    %c0_5 = arith.constant 0 : index
    %c0_6 = arith.constant 0 : index
    %11 = vector.load %arg6[%c0_5, %c0_6] : memref<128x128xf32, #tpu.memory_space<vmem>>, vector<128x128xf32>
    tpu.vector_store %arg6[%c0_5, %c0_6], %10 {strides = array<i32>} : memref<128x128xf32, #tpu.memory_space<vmem>>, vector<128x128xf32>,
    %c0_i32_7 = arith.constant 0 : i32
    %12 = arith.cmpi eq, %arg1, %c0_i32_7 : i32
    %13 = arith.extui %12 : i1 to i32
    %c0_i32_8 = arith.constant 0 : i32
    %14 = arith.cmpi ne, %13, %c0_i32_8 : i32
    scf.if %14 {
      %c0_9 = arith.constant 0 : index
      %c0_10 = arith.constant 0 : index
      %15 = vector.load %arg6[%c0_9, %c0_10] : memref<128x128xf32, #tpu.memory_space<vmem>>, vector<128x128xf32>
      %c0_11 = arith.constant 0 : index
      %c0_12 = arith.constant 0 : index
      %16 = vector.load %arg4[%c0_11, %c0_12] : memref<1x128xf32, #tpu.memory_space<vmem>>, vector<1x128xf32>
      %17 = vector.broadcast %16 : vector<1x128xf32> to vector<128x128xf32>
      %18 = arith.addf %15, %17 : vector<128x128xf32>
      %cst_13 = arith.constant 0.000000e+00 : f32
      %19 = vector.broadcast %cst_13 : f32 to vector<128x128xf32>
      %20 = arith.maximumf %18, %19 : vector<128x128xf32>
      %21 = arith.truncf %20 : vector<128x128xf32> to vector<128x128xbf16>
      %c0_14 = arith.constant 0 : index
      %c0_15 = arith.constant 0 : index
      %22 = vector.load %arg5[%c0_14, %c0_15] : memref<128x128xbf16, #tpu.memory_space<vmem>>, vector<128x128xbf16>
      tpu.vector_store %arg5[%c0_14, %c0_15], %21 {strides = array<i32>} : memref<128x128xbf16, #tpu.memory_space<vmem>>, vector<128x128xbf16>,
    } else {
    }
    return
  }
  func.func @transform_0(%arg0: i32, %arg1: i32) -> (i32, i32) {
    %c0_i32 = arith.constant 0 : i32
    return %arg0, %arg1 : i32, i32
  }
  func.func @transform_1(%arg0: i32, %arg1: i32) -> (i32, i32) {
    %c0_i32 = arith.constant 0 : i32
    %c0_i32_0 = arith.constant 0 : i32
    %c0_i32_1 = arith.constant 0 : i32
    return %c0_i32, %c0_i32_0 : i32, i32
  }
  func.func @transform_2(%arg0: i32, %arg1: i32) -> (i32, i32) {
    %c0_i32 = arith.constant 0 : i32
    %c0_i32_0 = arith.constant 0 : i32
    %c0_i32_1 = arith.constant 0 : i32
    return %c0_i32, %c0_i32_0 : i32, i32
  }
  func.func @transform_3(%arg0: i32, %arg1: i32) -> (i32, i32) {
    %c0_i32 = arith.constant 0 : i32
    %c0_i32_0 = arith.constant 0 : i32
    return %arg0, %c0_i32 : i32, i32
  }
}

module attributes {stable_mosaic.version = 11 : i64} {
  func.func @_propagate_kernel(%arg0: i32, %arg1: i32, %arg2: memref<128x128xbf16, #tpu.memory_space<vmem>>, %arg3: memref<128x128xbf16, #tpu.memory_space<vmem>>, %arg4: memref<1x128xf32, #tpu.memory_space<vmem>>, %arg5: memref<128x128xf32, #tpu.memory_space<vmem>>, %arg6: memref<128x128xf32, #tpu.memory_space<vmem>>) attributes {dimension_semantics = [#tpu.dimension_semantics<parallel>, #tpu.dimension_semantics<arbitrary>], iteration_bounds = array<i64: 1, 1>, scalar_prefetch = 0 : i64, scratch_operands = 1 : i64, tpu.core_type = #tpu.core_type<tc>, window_params = [{transform_indices = @transform_0, window_bounds = array<i64: 128, 128>}, {pipeline_mode = #tpu.pipeline_mode<synchronous>, transform_indices = @transform_1, window_bounds = array<i64: 128, 128>}, {pipeline_mode = #tpu.pipeline_mode<synchronous>, transform_indices = @transform_2, window_bounds = array<i64: 1, 128>}, {transform_indices = @transform_3, window_bounds = array<i64: 128, 128>}]} {
    %c0_i32 = arith.constant 0 : i32
    %0 = arith.cmpi eq, %arg1, %c0_i32 : i32
    %1 = arith.extui %0 : i1 to i32
    %c0_i32_0 = arith.constant 0 : i32
    %2 = arith.cmpi ne, %1, %c0_i32_0 : i32
    scf.if %2 {
      %cst_9 = arith.constant 0.000000e+00 : f32
      %15 = vector.broadcast %cst_9 : f32 to vector<128x128xf32>
      %c0_10 = arith.constant 0 : index
      %c0_11 = arith.constant 0 : index
      %16 = vector.load %arg6[%c0_10, %c0_11] : memref<128x128xf32, #tpu.memory_space<vmem>>, vector<128x128xf32>
      tpu.vector_store %arg6[%c0_10, %c0_11], %15 {strides = array<i32>} : memref<128x128xf32, #tpu.memory_space<vmem>>, vector<128x128xf32>,
    } else {
    }
    %c128_i32 = arith.constant 128 : i32
    %3 = arith.muli %arg1, %c128_i32 : i32
    %4 = tpu.assume_multiple %3, 128 : i32
    %5 = arith.index_cast %4 : i32 to index
    %c0 = arith.constant 0 : index
    %6 = vector.load %arg3[%5, %c0] : memref<128x128xbf16, #tpu.memory_space<vmem>>, vector<128x128xbf16>
    %c0_1 = arith.constant 0 : index
    %c0_2 = arith.constant 0 : index
    %7 = vector.load %arg6[%c0_1, %c0_2] : memref<128x128xf32, #tpu.memory_space<vmem>>, vector<128x128xf32>
    %c0_3 = arith.constant 0 : index
    %c0_4 = arith.constant 0 : index
    %8 = vector.load %arg2[%c0_3, %c0_4] : memref<128x128xbf16, #tpu.memory_space<vmem>>, vector<128x128xbf16>
    %cst = arith.constant dense<0.000000e+00> : vector<128x128xf32>
    %9 = tpu.matmul %8, %6, %cst {dimension_numbers = #tpu.dot_dimension_numbers<[1], [0], [0], [1], [0, 0, 1, 1], [], []>} : vector<128x128xbf16>, vector<128x128xbf16>, vector<128x128xf32> -> vector<128x128xf32>
    %10 = arith.addf %7, %9 : vector<128x128xf32>
    %c0_5 = arith.constant 0 : index
    %c0_6 = arith.constant 0 : index
    %11 = vector.load %arg6[%c0_5, %c0_6] : memref<128x128xf32, #tpu.memory_space<vmem>>, vector<128x128xf32>
    tpu.vector_store %arg6[%c0_5, %c0_6], %10 {strides = array<i32>} : memref<128x128xf32, #tpu.memory_space<vmem>>, vector<128x128xf32>,
    %c0_i32_7 = arith.constant 0 : i32
    %12 = arith.cmpi eq, %arg1, %c0_i32_7 : i32
    %13 = arith.extui %12 : i1 to i32
    %c0_i32_8 = arith.constant 0 : i32
    %14 = arith.cmpi ne, %13, %c0_i32_8 : i32
    scf.if %14 {
      %c0_9 = arith.constant 0 : index
      %c0_10 = arith.constant 0 : index
      %15 = vector.load %arg6[%c0_9, %c0_10] : memref<128x128xf32, #tpu.memory_space<vmem>>, vector<128x128xf32>
      %c0_11 = arith.constant 0 : index
      %c0_12 = arith.constant 0 : index
      %16 = vector.load %arg4[%c0_11, %c0_12] : memref<1x128xf32, #tpu.memory_space<vmem>>, vector<1x128xf32>
      %17 = vector.broadcast %16 : vector<1x128xf32> to vector<128x128xf32>
      %18 = arith.addf %15, %17 : vector<128x128xf32>
      %19 = tpu.iota {dimensions = array<i32: 1>} : vector<128x128xi32>
      %c8_i32 = arith.constant 8 : i32
      %20 = vector.broadcast %c8_i32 : i32 to vector<128x128xi32>
      %21 = arith.cmpi slt, %19, %20 : vector<128x128xi32>
      %cst_13 = arith.constant 0xFF800000 : f32
      %22 = vector.broadcast %cst_13 : f32 to vector<128x128xf32>
      %23 = arith.select %21, %18, %22 : vector<128x128xi1>, vector<128x128xf32>
      %cst_14 = arith.constant dense<0xFF800000> : vector<128xf32>
      %24 = vector.multi_reduction <maximumf>, %23, %cst_14 [1] : vector<128x128xf32> to vector<128xf32>
      %25 = vector.shape_cast %24 : vector<128xf32> to vector<128x1xf32>
      %26 = vector.broadcast %25 : vector<128x1xf32> to vector<128x128xf32>
      %27 = arith.subf %23, %26 : vector<128x128xf32>
      %28 = math.exp %27 : vector<128x128xf32>
      %cst_15 = arith.constant dense<0.000000e+00> : vector<128xf32>
      %29 = vector.multi_reduction <add>, %28, %cst_15 [1] : vector<128x128xf32> to vector<128xf32>
      %30 = vector.shape_cast %29 : vector<128xf32> to vector<128x1xf32>
      %31 = math.log %30 : vector<128x1xf32>
      %32 = vector.broadcast %31 : vector<128x1xf32> to vector<128x128xf32>
      %33 = arith.subf %27, %32 : vector<128x128xf32>
      %cst_16 = arith.constant 0.000000e+00 : f32
      %34 = vector.broadcast %cst_16 : f32 to vector<128x128xf32>
      %35 = arith.select %21, %33, %34 : vector<128x128xi1>, vector<128x128xf32>
      %c0_17 = arith.constant 0 : index
      %c0_18 = arith.constant 0 : index
      %36 = vector.load %arg5[%c0_17, %c0_18] : memref<128x128xf32, #tpu.memory_space<vmem>>, vector<128x128xf32>
      tpu.vector_store %arg5[%c0_17, %c0_18], %35 {strides = array<i32>} : memref<128x128xf32, #tpu.memory_space<vmem>>, vector<128x128xf32>,
    } else {
    }
    return
  }
  func.func @transform_0(%arg0: i32, %arg1: i32) -> (i32, i32) {
    %c0_i32 = arith.constant 0 : i32
    return %arg0, %arg1 : i32, i32
  }
  func.func @transform_1(%arg0: i32, %arg1: i32) -> (i32, i32) {
    %c0_i32 = arith.constant 0 : i32
    %c0_i32_0 = arith.constant 0 : i32
    %c0_i32_1 = arith.constant 0 : i32
    return %c0_i32, %c0_i32_0 : i32, i32
  }
  func.func @transform_2(%arg0: i32, %arg1: i32) -> (i32, i32) {
    %c0_i32 = arith.constant 0 : i32
    %c0_i32_0 = arith.constant 0 : i32
    %c0_i32_1 = arith.constant 0 : i32
    return %c0_i32, %c0_i32_0 : i32, i32
  }
  func.func @transform_3(%arg0: i32, %arg1: i32) -> (i32, i32) {
    %c0_i32 = arith.constant 0 : i32
    %c0_i32_0 = arith.constant 0 : i32
    return %arg0, %c0_i32 : i32, i32
  }
}

</mosaic_0001>

<llo_original>
// kernel: gcn_forward.6
$region0: #{gcn_forward.6}
  #allocation0 [shape = 'u32[]', space=smem, size = 0x4, offset = 0x4, fixed_abs, tag = 'smem constant byte address 0x4 - core index']
  #allocation1 [shape = 'u32[144,128]{1,0:T(1,128)}', space=vmem, size = 0x12000, scoped, tag = 'internal scratch']
  #allocation2 [shape = 'f32[128,128]{1,0:T(8,128)}', space=vmem, size = 0x10000, scoped, tag = 'scratch operand']
  %s0 = inlined_call_operand.hbm [shape: bf16[128,128], index: 0, kind: input, shape index: {}]
  %s1 = inlined_call_operand.hbm [shape: bf16[128,128], index: 1, kind: input, shape index: {}]
  %s2 = inlined_call_operand.hbm [shape: bf16[128,128], index: 2, kind: output, shape index: {}]
  %s3 = sld [smem:[#allocation0]]
  $region34: #{gcn_forward.6} parent=0
    _
  %s5 = ssub.s32 1, %s3
  %s6 = scalar_select 0, %s5, %s3
  $region1: #{gcn_forward.6} parent=0
    #allocation3 [shape = 'u8[32768]{0}', space=vmem, size = 0x8000, scoped, tag = 'input window, operand 0, single buffered']
    #allocation4 [shape = 's32[1]{0}', space=sflag, size = 0x4, scoped, tag = 'scoped memory for gcn_forward.6']
    #allocation5 [shape = 's32[1]{0}', space=sflag, size = 0x4, scoped, tag = 'scoped memory for gcn_forward.6']
    #allocation6 [shape = 'u8[32768]{0}', space=vmem, size = 0x8000, scoped, tag = 'input window, operand 1, single buffered']
    #allocation7 [shape = 's32[1]{0}', space=sflag, size = 0x4, scoped, tag = 'scoped memory for gcn_forward.6']
    #allocation8 [shape = 'u8[32768]{0}', space=vmem, size = 0x8000, scoped, tag = 'output window, operand 0, single buffered']
    %7 = vsyncpa [#allocation4], 0
    %8 = vsyncpa [#allocation7], 0
    %9 = vsyncpa [#allocation5], 0
    // Predicated region
    $region2: #{gcn_forward.6} parent=1 // pred_check
      _
    $region3: #{gcn_forward.6} parent=1 // pred_check_branch
      %11 = sbr.rel (0) target = $region5
    $region4: #{gcn_forward.6} parent=1 // pred_region
      %s13 = ssub.s32 1024, 1024
      %14 = vsyncadd [#allocation4], %s13
      %s15 = sshll.u32 [#allocation3], 4
      %s16 = int_to_ptr.vmem [resolvable:$true] %s15
      %21 = dma.hbm_to_vmem [thread:$0]  %s0, 1024, %s16, [#allocation4], 64, 64, 4
    $region5: #{gcn_forward.6} parent=1 // pred_fallthru
      _
    // Predicated region
    $region6: #{gcn_forward.6} parent=1 // pred_check
      _
    $region7: #{gcn_forward.6} parent=1 // pred_check_branch
      %23 = sbr.rel (0) target = $region9
    $region8: #{gcn_forward.6} parent=1 // pred_region
      %s25 = ssub.s32 1024, 1024
      %26 = vsyncadd [#allocation7], %s25
      %s27 = sshll.u32 [#allocation6], 4
      %s28 = int_to_ptr.vmem [resolvable:$true] %s27
      %33 = dma.hbm_to_vmem [thread:$0]  %s1, 1024, %s28, [#allocation7], 64, 64, 4
    $region9: #{gcn_forward.6} parent=1 // pred_fallthru
      _
    // Predicated region
    $region10: #{gcn_forward.6} parent=1 // pred_check
      _
    $region11: #{gcn_forward.6} parent=1 // pred_check_branch
      %35 = sbr.rel (0) target = $region13
    $region12: #{gcn_forward.6} parent=1 // pred_region
      %36 = dma.done [#allocation4], 1024
    $region13: #{gcn_forward.6} parent=1 // pred_fallthru
      _
    // Predicated region
    $region14: #{gcn_forward.6} parent=1 // pred_check
      _
    $region15: #{gcn_forward.6} parent=1 // pred_check_branch
      %38 = sbr.rel (0) target = $region17
    $region16: #{gcn_forward.6} parent=1 // pred_region
      %39 = dma.done [#allocation7], 1024
    $region17: #{gcn_forward.6} parent=1 // pred_fallthru
      _
    %p41 = scmp.eq.s32.totalorder 0, 0
    // Predicated region
    $region18: #{gcn_forward.6} parent=1 // pred_check
      %p42 = pneg %p41
    $region19: #{gcn_forward.6} parent=1 // pred_check_branch
      %44 = sbr.rel (%p42) target = $region21
    $region20: #{gcn_forward.6} parent=1 // pred_region
      %45 = vst [vmem:[#allocation2] sm:$0xff] 0.0
      %46 = vst [vmem:[#allocation2 + $0x8] sm:$0xff] 0.0
      %47 = vst [vmem:[#allocation2 + $0x10] sm:$0xff] 0.0
      %48 = vst [vmem:[#allocation2 + $0x18] sm:$0xff] 0.0
      %49 = vst [vmem:[#allocation2 + $0x20] sm:$0xff] 0.0
      %50 = vst [vmem:[#allocation2 + $0x28] sm:$0xff] 0.0
      %51 = vst [vmem:[#allocation2 + $0x30] sm:$0xff] 0.0
      %52 = vst [vmem:[#allocation2 + $0x38] sm:$0xff] 0.0
      %53 = vst [vmem:[#allocation2 + $0x40] sm:$0xff] 0.0
      %54 = vst [vmem:[#allocation2 + $0x48] sm:$0xff] 0.0
      %55 = vst [vmem:[#allocation2 + $0x50] sm:$0xff] 0.0
      %56 = vst [vmem:[#allocation2 + $0x58] sm:$0xff] 0.0
      %57 = vst [vmem:[#allocation2 + $0x60] sm:$0xff] 0.0
      %58 = vst [vmem:[#allocation2 + $0x68] sm:$0xff] 0.0
      %59 = vst [vmem:[#allocation2 + $0x70] sm:$0xff] 0.0
      %60 = vst [vmem:[#allocation2 + $0x78] sm:$0xff] 0.0
    $region21: #{gcn_forward.6} parent=1 // pred_fallthru
      _
    %v61 = vld [vmem:[#allocation2] sm:$0xff]
    %v62 = vld [vmem:[#allocation2 + $0x8] sm:$0xff]
    %v63 = vld [vmem:[#allocation2 + $0x10] sm:$0xff]
    %v64 = vld [vmem:[#allocation2 + $0x18] sm:$0xff]
    %v65 = vld [vmem:[#allocation2 + $0x20] sm:$0xff]
    %v66 = vld [vmem:[#allocation2 + $0x28] sm:$0xff]
    %v67 = vld [vmem:[#allocation2 + $0x30] sm:$0xff]
    %v68 = vld [vmem:[#allocation2 + $0x38] sm:$0xff]
    %v69 = vld [vmem:[#allocation2 + $0x40] sm:$0xff]
    %v70 = vld [vmem:[#allocation2 + $0x48] sm:$0xff]
    %v71 = vld [vmem:[#allocation2 + $0x50] sm:$0xff]
    %v72 = vld [vmem:[#allocation2 + $0x58] sm:$0xff]
    %v73 = vld [vmem:[#allocation2 + $0x60] sm:$0xff]
    %v74 = vld [vmem:[#allocation2 + $0x68] sm:$0xff]
    %v75 = vld [vmem:[#allocation2 + $0x70] sm:$0xff]
    %v76 = vld [vmem:[#allocation2 + $0x78] sm:$0xff]
    %v77 = vld [vmem:[#allocation3] sm:$0xf]
    %v78 = vld [vmem:[#allocation3 + $0x4] sm:$0xf]
    %v79 = vld [vmem:[#allocation3 + $0x8] sm:$0xf]
    %v80 = vld [vmem:[#allocation3 + $0xc] sm:$0xf]
    %v81 = vld [vmem:[#allocation3 + $0x10] sm:$0xf]
    %v82 = vld [vmem:[#allocation3 + $0x14] sm:$0xf]
    %v83 = vld [vmem:[#allocation3 + $0x18] sm:$0xf]
    %v84 = vld [vmem:[#allocation3 + $0x1c] sm:$0xf]
    %v85 = vld [vmem:[#allocation3 + $0x20] sm:$0xf]
    %v86 = vld [vmem:[#allocation3 + $0x24] sm:$0xf]
    %v87 = vld [vmem:[#allocation3 + $0x28] sm:$0xf]
    %v88 = vld [vmem:[#allocation3 + $0x2c] sm:$0xf]
    %v89 = vld [vmem:[#allocation3 + $0x30] sm:$0xf]
    %v90 = vld [vmem:[#allocation3 + $0x34] sm:$0xf]
    %v91 = vld [vmem:[#allocation3 + $0x38] sm:$0xf]
    %v92 = vld [vmem:[#allocation3 + $0x3c] sm:$0xf]
    %v93 = vld [vmem:[#allocation6] sm:$0xf]
    %v94 = vld [vmem:[#allocation6 + $0x4] sm:$0xf]
    %v95 = vld [vmem:[#allocation6 + $0x8] sm:$0xf]
    %v96 = vld [vmem:[#allocation6 + $0xc] sm:$0xf]
    %v97 = vld [vmem:[#allocation6 + $0x10] sm:$0xf]
    %v98 = vld [vmem:[#allocation6 + $0x14] sm:$0xf]
    %v99 = vld [vmem:[#allocation6 + $0x18] sm:$0xf]
    %v100 = vld [vmem:[#allocation6 + $0x1c] sm:$0xf]
    %v101 = vld [vmem:[#allocation6 + $0x20] sm:$0xf]
    %v102 = vld [vmem:[#allocation6 + $0x24] sm:$0xf]
    %v103 = vld [vmem:[#allocation6 + $0x28] sm:$0xf]
    %v104 = vld [vmem:[#allocation6 + $0x2c] sm:$0xf]
    %v105 = vld [vmem:[#allocation6 + $0x30] sm:$0xf]
    %v106 = vld [vmem:[#allocation6 + $0x34] sm:$0xf]
    %v107 = vld [vmem:[#allocation6 + $0x38] sm:$0xf]
    %v108 = vld [vmem:[#allocation6 + $0x3c] sm:$0xf]
    %v125 = vunpack.c.l.b16 %v77
    %v126 = vunpack.c.l.b16 %v78
    %v127 = vunpack.c.l.b16 %v79
    %v128 = vunpack.c.l.b16 %v80
    %v129 = vunpack.c.l.b16 %v81
    %v130 = vunpack.c.l.b16 %v82
    %v131 = vunpack.c.l.b16 %v83
    %v132 = vunpack.c.l.b16 %v84
    %v133 = vunpack.c.l.b16 %v85
    %v134 = vunpack.c.l.b16 %v86
    %v135 = vunpack.c.l.b16 %v87
    %v136 = vunpack.c.l.b16 %v88
    %v137 = vunpack.c.l.b16 %v89
    %v138 = vunpack.c.l.b16 %v90
    %v139 = vunpack.c.l.b16 %v91
    %v140 = vunpack.c.l.b16 %v92
    %v141 = vpack.c.b16 %v126, %v125
    %v142 = vpack.c.b16 %v128, %v127
    %v143 = vpack.c.b16 %v130, %v129
    %v144 = vpack.c.b16 %v132, %v131
    %v145 = vpack.c.b16 %v134, %v133
    %v146 = vpack.c.b16 %v136, %v135
    %v147 = vpack.c.b16 %v138, %v137
    %v148 = vpack.c.b16 %v140, %v139
    %v173 = vunpack.c.l.b16 %v93
    %v174 = vunpack.c.l.b16 %v94
    %v175 = vunpack.c.l.b16 %v95
    %v176 = vunpack.c.l.b16 %v96
    %v177 = vunpack.c.l.b16 %v97
    %v178 = vunpack.c.l.b16 %v98
    %v179 = vunpack.c.l.b16 %v99
    %v180 = vunpack.c.l.b16 %v100
    %v181 = vunpack.c.l.b16 %v101
    %v182 = vunpack.c.l.b16 %v102
    %v183 = vunpack.c.l.b16 %v103
    %v184 = vunpack.c.l.b16 %v104
    %v185 = vunpack.c.l.b16 %v105
    %v186 = vunpack.c.l.b16 %v106
    %v187 = vunpack.c.l.b16 %v107
    %v188 = vunpack.c.l.b16 %v108
    %v189 = vpack.c.b16 %v174, %v173
    %v190 = vpack.c.b16 %v176, %v175
    %v191 = vpack.c.b16 %v178, %v177
    %v192 = vpack.c.b16 %v180, %v179
    %v193 = vpack.c.b16 %v182, %v181
    %v194 = vpack.c.b16 %v184, %v183
    %v195 = vpack.c.b16 %v186, %v185
    %v196 = vpack.c.b16 %v188, %v187
    %205 = vmatprep.subr.bf16.mxu0 0
    %206 = vmatpush1.bf16.msra.mxu0 %v189
    %207 = vmatprep.subr.bf16.mxu0 0
    %208 = vmatpush1.bf16.msra.mxu0 %v190
    %209 = vmatprep.subr.bf16.mxu0 0
    %210 = vmatpush1.bf16.msra.mxu0 %v191
    %211 = vmatprep.subr.bf16.mxu0 0
    %212 = vmatpush1.bf16.msra.mxu0 %v192
    %213 = vmatprep.subr.bf16.mxu0 0
    %214 = vmatpush1.bf16.msra.mxu0 %v193
    %215 = vmatprep.subr.bf16.mxu0 0
    %216 = vmatpush1.bf16.msra.mxu0 %v194
    %217 = vmatprep.subr.bf16.mxu0 0
    %218 = vmatpush1.bf16.msra.mxu0 %v195
    %219 = vmatprep.subr.bf16.mxu0 0
    %220 = vmatpush1.bf16.msra.mxu0 %v196
    %221 = vmatprep.subr.bf16.mxu0 0
    %222 = vmatpush1.bf16.msra.mxu0 0
    %223 = vmatprep.subr.bf16.mxu0 0
    %224 = vmatpush1.bf16.msra.mxu0 0
    %225 = vmatprep.subr.bf16.mxu0 0
    %226 = vmatpush1.bf16.msra.mxu0 0
    %227 = vmatprep.subr.bf16.mxu0 0
    %228 = vmatpush1.bf16.msra.mxu0 0
    %229 = vmatprep.subr.bf16.mxu0 0
    %230 = vmatpush1.bf16.msra.mxu0 0
    %231 = vmatprep.subr.bf16.mxu0 0
    %232 = vmatpush1.bf16.msra.mxu0 0
    %233 = vmatprep.subr.bf16.mxu0 0
    %234 = vmatpush1.bf16.msra.mxu0 0
    %235 = vmatprep.subr.bf16.mxu0 0
    %236 = vmatpush1.bf16.msra.mxu0 0
    %237 = vmatprep.mubr.bf16.mxu0 0
    %238 = vmatmul.mubr.bf16.gmra.mrb[0].mxu0 %v141
    %v239 = vpop.f32.mrb[0].mxu0
    %v240 = vadd.f32 0.0, %v239
    %v241 = vpop.f32.mrb[0].mxu0
    %v242 = vpop.f32.mrb[0].mxu0
    %v243 = vadd.f32 0.0, %v242
    %v244 = vpop.f32.mrb[0].mxu0
    %245 = vmatprep.mubr.bf16.mxu0 0
    %246 = vmatmul.mubr.bf16.gmra.mrb[0].mxu0 %v142
    %v247 = vpop.f32.mrb[0].mxu0
    %v248 = vadd.f32 0.0, %v247
    %v249 = vpop.f32.mrb[0].mxu0
    %v250 = vpop.f32.mrb[0].mxu0
    %v251 = vadd.f32 0.0, %v250
    %v252 = vpop.f32.mrb[0].mxu0
    %253 = vmatprep.mubr.bf16.mxu0 0
    %254 = vmatmul.mubr.bf16.gmra.mrb[0].mxu0 %v143
    %v255 = vpop.f32.mrb[0].mxu0
    %v256 = vadd.f32 0.0, %v255
    %v257 = vpop.f32.mrb[0].mxu0
    %v258 = vpop.f32.mrb[0].mxu0
    %v259 = vadd.f32 0.0, %v258
    %v260 = vpop.f32.mrb[0].mxu0
    %261 = vmatprep.mubr.bf16.mxu0 0
    %262 = vmatmul.mubr.bf16.gmra.mrb[0].mxu0 %v144
    %v263 = vpop.f32.mrb[0].mxu0
    %v264 = vadd.f32 0.0, %v263
    %v265 = vpop.f32.mrb[0].mxu0
    %v266 = vpop.f32.mrb[0].mxu0
    %v267 = vadd.f32 0.0, %v266
    %v268 = vpop.f32.mrb[0].mxu0
    %269 = vmatprep.mubr.bf16.mxu0 0
    %270 = vmatmul.mubr.bf16.gmra.mrb[0].mxu0 %v145
    %v271 = vpop.f32.mrb[0].mxu0
    %v272 = vadd.f32 0.0, %v271
    %v273 = vpop.f32.mrb[0].mxu0
    %v274 = vpop.f32.mrb[0].mxu0
    %v275 = vadd.f32 0.0, %v274
    %v276 = vpop.f32.mrb[0].mxu0
    %277 = vmatprep.mubr.bf16.mxu0 0
    %278 = vmatmul.mubr.bf16.gmra.mrb[0].mxu0 %v146
    %v279 = vpop.f32.mrb[0].mxu0
    %v280 = vadd.f32 0.0, %v279
    %v281 = vpop.f32.mrb[0].mxu0
    %v282 = vpop.f32.mrb[0].mxu0
    %v283 = vadd.f32 0.0, %v282
    %v284 = vpop.f32.mrb[0].mxu0
    %285 = vmatprep.mubr.bf16.mxu0 0
    %286 = vmatmul.mubr.bf16.gmra.mrb[0].mxu0 %v147
    %v287 = vpop.f32.mrb[0].mxu0
    %v288 = vadd.f32 0.0, %v287
    %v289 = vpop.f32.mrb[0].mxu0
    %v290 = vpop.f32.mrb[0].mxu0
    %v291 = vadd.f32 0.0, %v290
    %v292 = vpop.f32.mrb[0].mxu0
    %293 = vmatprep.mubr.bf16.mxu0 0
    %294 = vmatmul.mubr.bf16.gmra.mrb[0].mxu0 %v148
    %v295 = vpop.f32.mrb[0].mxu0
    %v296 = vadd.f32 0.0, %v295
    %v297 = vpop.f32.mrb[0].mxu0
    %v298 = vpop.f32.mrb[0].mxu0
    %v299 = vadd.f32 0.0, %v298
    %v300 = vpop.f32.mrb[0].mxu0
    %301 = vdwg.mxu0
    %v302 = vadd.f32 %v61, %v240
    %v303 = vadd.f32 %v62, %v243
    %v304 = vadd.f32 %v63, %v248
    %v305 = vadd.f32 %v64, %v251
    %v306 = vadd.f32 %v65, %v256
    %v307 = vadd.f32 %v66, %v259
    %v308 = vadd.f32 %v67, %v264
    %v309 = vadd.f32 %v68, %v267
    %v310 = vadd.f32 %v69, %v272
    %v311 = vadd.f32 %v70, %v275
    %v312 = vadd.f32 %v71, %v280
    %v313 = vadd.f32 %v72, %v283
    %v314 = vadd.f32 %v73, %v288
    %v315 = vadd.f32 %v74, %v291
    %v316 = vadd.f32 %v75, %v296
    %v317 = vadd.f32 %v76, %v299
    %318 = vst [vmem:[#allocation2] sm:$0xff] %v302
    %319 = vst [vmem:[#allocation2 + $0x8] sm:$0xff] %v303
    %320 = vst [vmem:[#allocation2 + $0x10] sm:$0xff] %v304
    %321 = vst [vmem:[#allocation2 + $0x18] sm:$0xff] %v305
    %322 = vst [vmem:[#allocation2 + $0x20] sm:$0xff] %v306
    %323 = vst [vmem:[#allocation2 + $0x28] sm:$0xff] %v307
    %324 = vst [vmem:[#allocation2 + $0x30] sm:$0xff] %v308
    %325 = vst [vmem:[#allocation2 + $0x38] sm:$0xff] %v309
    %326 = vst [vmem:[#allocation2 + $0x40] sm:$0xff] %v310
    %327 = vst [vmem:[#allocation2 + $0x48] sm:$0xff] %v311
    %328 = vst [vmem:[#allocation2 + $0x50] sm:$0xff] %v312
    %329 = vst [vmem:[#allocation2 + $0x58] sm:$0xff] %v313
    %330 = vst [vmem:[#allocation2 + $0x60] sm:$0xff] %v314
    %331 = vst [vmem:[#allocation2 + $0x68] sm:$0xff] %v315
    %332 = vst [vmem:[#allocation2 + $0x70] sm:$0xff] %v316
    %333 = vst [vmem:[#allocation2 + $0x78] sm:$0xff] %v317
    // Predicated region
    $region22: #{gcn_forward.6} parent=1 // pred_check
      %p334 = pneg %p41
    $region23: #{gcn_forward.6} parent=1 // pred_check_branch
      %336 = sbr.rel (%p334) target = $region25
    $region24: #{gcn_forward.6} parent=1 // pred_region
      %v337 = vld [vmem:[#allocation2] sm:$0xff]
      %v338 = vld [vmem:[#allocation2 + $0x8] sm:$0xff]
      %v339 = vld [vmem:[#allocation2 + $0x10] sm:$0xff]
      %v340 = vld [vmem:[#allocation2 + $0x18] sm:$0xff]
      %v341 = vld [vmem:[#allocation2 + $0x20] sm:$0xff]
      %v342 = vld [vmem:[#allocation2 + $0x28] sm:$0xff]
      %v343 = vld [vmem:[#allocation2 + $0x30] sm:$0xff]
      %v344 = vld [vmem:[#allocation2 + $0x38] sm:$0xff]
      %v345 = vld [vmem:[#allocation2 + $0x40] sm:$0xff]
      %v346 = vld [vmem:[#allocation2 + $0x48] sm:$0xff]
      %v347 = vld [vmem:[#allocation2 + $0x50] sm:$0xff]
      %v348 = vld [vmem:[#allocation2 + $0x58] sm:$0xff]
      %v349 = vld [vmem:[#allocation2 + $0x60] sm:$0xff]
      %v350 = vld [vmem:[#allocation2 + $0x68] sm:$0xff]
      %v351 = vld [vmem:[#allocation2 + $0x70] sm:$0xff]
      %v352 = vld [vmem:[#allocation2 + $0x78] sm:$0xff]
      %v353 = vpack.c.bf16 %v338, %v337
      %v354 = vpack.c.bf16 %v340, %v339
      %v355 = vpack.c.bf16 %v342, %v341
      %v356 = vpack.c.bf16 %v344, %v343
      %v357 = vpack.c.bf16 %v346, %v345
      %v358 = vpack.c.bf16 %v348, %v347
      %v359 = vpack.c.bf16 %v350, %v349
      %v360 = vpack.c.bf16 %v352, %v351
      %v369 = vunpack.c.l.b16 %v353
      %v370 = vunpack.c.h.b16 %v353
      %v371 = vunpack.c.l.b16 %v354
      %v372 = vunpack.c.h.b16 %v354
      %v373 = vunpack.c.l.b16 %v355
      %v374 = vunpack.c.h.b16 %v355
      %v375 = vunpack.c.l.b16 %v356
      %v376 = vunpack.c.h.b16 %v356
      %v377 = vunpack.c.l.b16 %v357
      %v378 = vunpack.c.h.b16 %v357
      %v379 = vunpack.c.l.b16 %v358
      %v380 = vunpack.c.h.b16 %v358
      %v381 = vunpack.c.l.b16 %v359
      %v382 = vunpack.c.h.b16 %v359
      %v383 = vunpack.c.l.b16 %v360
      %v384 = vunpack.c.h.b16 %v360
      %v385 = vpack.c.b16 %v369, %v369
      %v386 = vpack.c.b16 %v370, %v370
      %v387 = vpack.c.b16 %v371, %v371
      %v388 = vpack.c.b16 %v372, %v372
      %v389 = vpack.c.b16 %v373, %v373
      %v390 = vpack.c.b16 %v374, %v374
      %v391 = vpack.c.b16 %v375, %v375
      %v392 = vpack.c.b16 %v376, %v376
      %v393 = vpack.c.b16 %v377, %v377
      %v394 = vpack.c.b16 %v378, %v378
      %v395 = vpack.c.b16 %v379, %v379
      %v396 = vpack.c.b16 %v380, %v380
      %v397 = vpack.c.b16 %v381, %v381
      %v398 = vpack.c.b16 %v382, %v382
      %v399 = vpack.c.b16 %v383, %v383
      %v400 = vpack.c.b16 %v384, %v384
      %417 = vst [vmem:[#allocation8] sm:$0xf] %v385
      %418 = vst [vmem:[#allocation8 + $0x4] sm:$0xf] %v386
      %419 = vst [vmem:[#allocation8 + $0x8] sm:$0xf] %v387
      %420 = vst [vmem:[#allocation8 + $0xc] sm:$0xf] %v388
      %421 = vst [vmem:[#allocation8 + $0x10] sm:$0xf] %v389
      %422 = vst [vmem:[#allocation8 + $0x14] sm:$0xf] %v390
      %423 = vst [vmem:[#allocation8 + $0x18] sm:$0xf] %v391
      %424 = vst [vmem:[#allocation8 + $0x1c] sm:$0xf] %v392
      %425 = vst [vmem:[#allocation8 + $0x20] sm:$0xf] %v393
      %426 = vst [vmem:[#allocation8 + $0x24] sm:$0xf] %v394
      %427 = vst [vmem:[#allocation8 + $0x28] sm:$0xf] %v395
      %428 = vst [vmem:[#allocation8 + $0x2c] sm:$0xf] %v396
      %429 = vst [vmem:[#allocation8 + $0x30] sm:$0xf] %v397
      %430 = vst [vmem:[#allocation8 + $0x34] sm:$0xf] %v398
      %431 = vst [vmem:[#allocation8 + $0x38] sm:$0xf] %v399
      %432 = vst [vmem:[#allocation8 + $0x3c] sm:$0xf] %v400
    $region25: #{gcn_forward.6} parent=1 // pred_fallthru
      _
    // Predicated region
    $region26: #{gcn_forward.6} parent=1 // pred_check
      _
    $region27: #{gcn_forward.6} parent=1 // pred_check_branch
      %434 = sbr.rel (0) target = $region29
    $region28: #{gcn_forward.6} parent=1 // pred_region
      %s436 = ssub.s32 1024, 1024
      %437 = vsyncadd [#allocation5], %s436
      %s438 = sshll.u32 [#allocation8], 4
      %s439 = int_to_ptr.vmem [resolvable:$true] %s438
      %444 = dma.vmem_to_hbm [thread:$0]  %s439, 1024, %s2, [#allocation5], 64, 64, 4
    $region29: #{gcn_forward.6} parent=1 // pred_fallthru
      _
    // Predicated region
    $region30: #{gcn_forward.6} parent=1 // pred_check
      _
    $region31: #{gcn_forward.6} parent=1 // pred_check_branch
      %446 = sbr.rel (0) target = $region33
    $region32: #{gcn_forward.6} parent=1 // pred_region
      %447 = dma.done [#allocation5], 1024
    $region33: #{gcn_forward.6} parent=1 // pred_fallthru
      _
    %448 = vsyncpa [#allocation4], 1
    %449 = vsyncpa [#allocation7], 1
    %450 = vsyncpa [#allocation5], 1

// kernel: gcn_forward.11
$region0: #{gcn_forward.11}
  #allocation0 [shape = 'u32[]', space=smem, size = 0x4, offset = 0x4, fixed_abs, tag = 'smem constant byte address 0x4 - core index']
  #allocation1 [shape = 'u32[144,128]{1,0:T(1,128)}', space=vmem, size = 0x12000, scoped, tag = 'internal scratch']
  #allocation2 [shape = 'f32[128,128]{1,0:T(8,128)}', space=vmem, size = 0x10000, scoped, tag = 'scratch operand']
  %s0 = inlined_call_operand.hbm [shape: bf16[128,128], index: 0, kind: input, shape index: {}]
  %s1 = inlined_call_operand.hbm [shape: bf16[128,128], index: 1, kind: input, shape index: {}]
  %s2 = inlined_call_operand.hbm [shape: f32[1,128], index: 2, kind: input, shape index: {}]
  %s3 = inlined_call_operand.hbm [shape: f32[128,128], index: 3, kind: output, shape index: {}]
  %s4 = sld [smem:[#allocation0]]
  $region42: #{gcn_forward.11} parent=0
    _
  %s6 = ssub.s32 1, %s4
  %s7 = scalar_select 0, %s6, %s4
  $region1: #{gcn_forward.11} parent=0
    #allocation3 [shape = 'u8[32768]{0}', space=vmem, size = 0x8000, scoped, tag = 'input window, operand 0, single buffered']
    #allocation4 [shape = 's32[1]{0}', space=sflag, size = 0x4, scoped, tag = 'scoped memory for gcn_forward.11']
    #allocation5 [shape = 's32[1]{0}', space=sflag, size = 0x4, scoped, tag = 'scoped memory for gcn_forward.11']
    #allocation6 [shape = 'u8[32768]{0}', space=vmem, size = 0x8000, scoped, tag = 'input window, operand 1, single buffered']
    #allocation7 [shape = 's32[1]{0}', space=sflag, size = 0x4, scoped, tag = 'scoped memory for gcn_forward.11']
    #allocation8 [shape = 'u8[512]{0}', space=vmem, size = 0x400, scoped, tag = 'input window, operand 2, single buffered']
    #allocation9 [shape = 'u8[65536]{0}', space=vmem, size = 0x10000, scoped, tag = 'output window, operand 0, single buffered']
    %8 = vsyncpa [#allocation4], 0
    %9 = vsyncpa [#allocation7], 0
    %10 = vsyncpa [#allocation5], 0
    // Predicated region
    $region2: #{gcn_forward.11} parent=1 // pred_check
      _
    $region3: #{gcn_forward.11} parent=1 // pred_check_branch
      %12 = sbr.rel (0) target = $region5
    $region4: #{gcn_forward.11} parent=1 // pred_region
      %s14 = ssub.s32 1024, 1024
      %15 = vsyncadd [#allocation4], %s14
      %s16 = sshll.u32 [#allocation3], 4
      %s17 = int_to_ptr.vmem [resolvable:$true] %s16
      %22 = dma.hbm_to_vmem [thread:$0]  %s0, 1024, %s17, [#allocation4], 64, 64, 4
    $region5: #{gcn_forward.11} parent=1 // pred_fallthru
      _
    // Predicated region
    $region6: #{gcn_forward.11} parent=1 // pred_check
      _
    $region7: #{gcn_forward.11} parent=1 // pred_check_branch
      %24 = sbr.rel (0) target = $region9
    $region8: #{gcn_forward.11} parent=1 // pred_region
      %s26 = ssub.s32 1024, 1024
      %27 = vsyncadd [#allocation7], %s26
      %s28 = sshll.u32 [#allocation6], 4
      %s29 = int_to_ptr.vmem [resolvable:$true] %s28
      %34 = dma.hbm_to_vmem [thread:$0]  %s1, 1024, %s29, [#allocation7], 64, 64, 4
    $region9: #{gcn_forward.11} parent=1 // pred_fallthru
      _
    // Predicated region
    $region10: #{gcn_forward.11} parent=1 // pred_check
      _
    $region11: #{gcn_forward.11} parent=1 // pred_check_branch
      %36 = sbr.rel (0) target = $region13
    $region12: #{gcn_forward.11} parent=1 // pred_region
      %s38 = ssub.s32 16, 16
      %39 = vsyncadd [#allocation7], %s38
      %s41 = sshll.u32 [#allocation8], 4
      %s42 = int_to_ptr.vmem [resolvable:$true] %s41
      %44 = dma.hbm_to_vmem [thread:$0]  %s2, 16, %s42, [#allocation7]
    $region13: #{gcn_forward.11} parent=1 // pred_fallthru
      _
    // Predicated region
    $region14: #{gcn_forward.11} parent=1 // pred_check
      _
    $region15: #{gcn_forward.11} parent=1 // pred_check_branch
      %46 = sbr.rel (0) target = $region17
    $region16: #{gcn_forward.11} parent=1 // pred_region
      %47 = dma.done [#allocation4], 1024
    $region17: #{gcn_forward.11} parent=1 // pred_fallthru
      _
    // Predicated region
    $region18: #{gcn_forward.11} parent=1 // pred_check
      _
    $region19: #{gcn_forward.11} parent=1 // pred_check_branch
      %49 = sbr.rel (0) target = $region21
    $region20: #{gcn_forward.11} parent=1 // pred_region
      %50 = dma.done [#allocation7], 1024
    $region21: #{gcn_forward.11} parent=1 // pred_fallthru
      _
    // Predicated region
    $region22: #{gcn_forward.11} parent=1 // pred_check
      _
    $region23: #{gcn_forward.11} parent=1 // pred_check_branch
      %52 = sbr.rel (0) target = $region25
    $region24: #{gcn_forward.11} parent=1 // pred_region
      %53 = dma.done [#allocation7], 16
    $region25: #{gcn_forward.11} parent=1 // pred_fallthru
      _
    %p55 = scmp.eq.s32.totalorder 0, 0
    // Predicated region
    $region26: #{gcn_forward.11} parent=1 // pred_check
      %p56 = pneg %p55
    $region27: #{gcn_forward.11} parent=1 // pred_check_branch
      %58 = sbr.rel (%p56) target = $region29
    $region28: #{gcn_forward.11} parent=1 // pred_region
      %59 = vst [vmem:[#allocation2] sm:$0xff] 0.0
      %60 = vst [vmem:[#allocation2 + $0x8] sm:$0xff] 0.0
      %61 = vst [vmem:[#allocation2 + $0x10] sm:$0xff] 0.0
      %62 = vst [vmem:[#allocation2 + $0x18] sm:$0xff] 0.0
      %63 = vst [vmem:[#allocation2 + $0x20] sm:$0xff] 0.0
      %64 = vst [vmem:[#allocation2 + $0x28] sm:$0xff] 0.0
      %65 = vst [vmem:[#allocation2 + $0x30] sm:$0xff] 0.0
      %66 = vst [vmem:[#allocation2 + $0x38] sm:$0xff] 0.0
      %67 = vst [vmem:[#allocation2 + $0x40] sm:$0xff] 0.0
      %68 = vst [vmem:[#allocation2 + $0x48] sm:$0xff] 0.0
      %69 = vst [vmem:[#allocation2 + $0x50] sm:$0xff] 0.0
      %70 = vst [vmem:[#allocation2 + $0x58] sm:$0xff] 0.0
      %71 = vst [vmem:[#allocation2 + $0x60] sm:$0xff] 0.0
      %72 = vst [vmem:[#allocation2 + $0x68] sm:$0xff] 0.0
      %73 = vst [vmem:[#allocation2 + $0x70] sm:$0xff] 0.0
      %74 = vst [vmem:[#allocation2 + $0x78] sm:$0xff] 0.0
    $region29: #{gcn_forward.11} parent=1 // pred_fallthru
      _
    %s75 = smul.u32 0, 128
    %s76 = sshra.s32 %s75, 3
    %s77 = sand.u32 %s75, 7
    %s78 = smul.addr %s76, 4
    %s79 = scalar_lea.vmem [#allocation6], %s78
    %v80 = vld [vmem:[%s79] sm:$0xf]
    %v81 = vld [vmem:[%s79 + $0x4] sm:$0xf]
    %v82 = vld [vmem:[%s79 + $0x8] sm:$0xf]
    %v83 = vld [vmem:[%s79 + $0xc] sm:$0xf]
    %v84 = vld [vmem:[%s79 + $0x10] sm:$0xf]
    %v85 = vld [vmem:[%s79 + $0x14] sm:$0xf]
    %v86 = vld [vmem:[%s79 + $0x18] sm:$0xf]
    %v87 = vld [vmem:[%s79 + $0x1c] sm:$0xf]
    %v88 = vld [vmem:[%s79 + $0x20] sm:$0xf]
    %v89 = vld [vmem:[%s79 + $0x24] sm:$0xf]
    %v90 = vld [vmem:[%s79 + $0x28] sm:$0xf]
    %v91 = vld [vmem:[%s79 + $0x2c] sm:$0xf]
    %v92 = vld [vmem:[%s79 + $0x30] sm:$0xf]
    %v93 = vld [vmem:[%s79 + $0x34] sm:$0xf]
    %v94 = vld [vmem:[%s79 + $0x38] sm:$0xf]
    %v95 = vld [vmem:[%s79 + $0x3c] sm:$0xf]
    %v96 = vld [vmem:[#allocation2] sm:$0xff]
    %v97 = vld [vmem:[#allocation2 + $0x8] sm:$0xff]
    %v98 = vld [vmem:[#allocation2 + $0x10] sm:$0xff]
    %v99 = vld [vmem:[#allocation2 + $0x18] sm:$0xff]
    %v100 = vld [vmem:[#allocation2 + $0x20] sm:$0xff]
    %v101 = vld [vmem:[#allocation2 + $0x28] sm:$0xff]
    %v102 = vld [vmem:[#allocation2 + $0x30] sm:$0xff]
    %v103 = vld [vmem:[#allocation2 + $0x38] sm:$0xff]
    %v104 = vld [vmem:[#allocation2 + $0x40] sm:$0xff]
    %v105 = vld [vmem:[#allocation2 + $0x48] sm:$0xff]
    %v106 = vld [vmem:[#allocation2 + $0x50] sm:$0xff]
    %v107 = vld [vmem:[#allocation2 + $0x58] sm:$0xff]
    %v108 = vld [vmem:[#allocation2 + $0x60] sm:$0xff]
    %v109 = vld [vmem:[#allocation2 + $0x68] sm:$0xff]
    %v110 = vld [vmem:[#allocation2 + $0x70] sm:$0xff]
    %v111 = vld [vmem:[#allocation2 + $0x78] sm:$0xff]
    %v112 = vld [vmem:[#allocation3] sm:$0xf]
    %v113 = vld [vmem:[#allocation3 + $0x4] sm:$0xf]
    %v114 = vld [vmem:[#allocation3 + $0x8] sm:$0xf]
    %v115 = vld [vmem:[#allocation3 + $0xc] sm:$0xf]
    %v116 = vld [vmem:[#allocation3 + $0x10] sm:$0xf]
    %v117 = vld [vmem:[#allocation3 + $0x14] sm:$0xf]
    %v118 = vld [vmem:[#allocation3 + $0x18] sm:$0xf]
    %v119 = vld [vmem:[#allocation3 + $0x1c] sm:$0xf]
    %v120 = vld [vmem:[#allocation3 + $0x20] sm:$0xf]
    %v121 = vld [vmem:[#allocation3 + $0x24] sm:$0xf]
    %v122 = vld [vmem:[#allocation3 + $0x28] sm:$0xf]
    %v123 = vld [vmem:[#allocation3 + $0x2c] sm:$0xf]
    %v124 = vld [vmem:[#allocation3 + $0x30] sm:$0xf]
    %v125 = vld [vmem:[#allocation3 + $0x34] sm:$0xf]
    %v126 = vld [vmem:[#allocation3 + $0x38] sm:$0xf]
    %v127 = vld [vmem:[#allocation3 + $0x3c] sm:$0xf]
    %v144 = vunpack.c.l.b16 %v112
    %v145 = vunpack.c.l.b16 %v113
    %v146 = vunpack.c.l.b16 %v114
    %v147 = vunpack.c.l.b16 %v115
    %v148 = vunpack.c.l.b16 %v116
    %v149 = vunpack.c.l.b16 %v117
    %v150 = vunpack.c.l.b16 %v118
    %v151 = vunpack.c.l.b16 %v119
    %v152 = vunpack.c.l.b16 %v120
    %v153 = vunpack.c.l.b16 %v121
    %v154 = vunpack.c.l.b16 %v122
    %v155 = vunpack.c.l.b16 %v123
    %v156 = vunpack.c.l.b16 %v124
    %v157 = vunpack.c.l.b16 %v125
    %v158 = vunpack.c.l.b16 %v126
    %v159 = vunpack.c.l.b16 %v127
    %v160 = vpack.c.b16 %v145, %v144
    %v161 = vpack.c.b16 %v147, %v146
    %v162 = vpack.c.b16 %v149, %v148
    %v163 = vpack.c.b16 %v151, %v150
    %v164 = vpack.c.b16 %v153, %v152
    %v165 = vpack.c.b16 %v155, %v154
    %v166 = vpack.c.b16 %v157, %v156
    %v167 = vpack.c.b16 %v159, %v158
    %v192 = vunpack.c.l.b16 %v80
    %v193 = vunpack.c.l.b16 %v81
    %v194 = vunpack.c.l.b16 %v82
    %v195 = vunpack.c.l.b16 %v83
    %v196 = vunpack.c.l.b16 %v84
    %v197 = vunpack.c.l.b16 %v85
    %v198 = vunpack.c.l.b16 %v86
    %v199 = vunpack.c.l.b16 %v87
    %v200 = vunpack.c.l.b16 %v88
    %v201 = vunpack.c.l.b16 %v89
    %v202 = vunpack.c.l.b16 %v90
    %v203 = vunpack.c.l.b16 %v91
    %v204 = vunpack.c.l.b16 %v92
    %v205 = vunpack.c.l.b16 %v93
    %v206 = vunpack.c.l.b16 %v94
    %v207 = vunpack.c.l.b16 %v95
    %v208 = vpack.c.b16 %v193, %v192
    %v209 = vpack.c.b16 %v195, %v194
    %v210 = vpack.c.b16 %v197, %v196
    %v211 = vpack.c.b16 %v199, %v198
    %v212 = vpack.c.b16 %v201, %v200
    %v213 = vpack.c.b16 %v203, %v202
    %v214 = vpack.c.b16 %v205, %v204
    %v215 = vpack.c.b16 %v207, %v206
    %224 = vmatprep.subr.bf16.mxu0 0
    %225 = vmatpush1.bf16.msra.mxu0 %v208
    %226 = vmatprep.subr.bf16.mxu0 0
    %227 = vmatpush1.bf16.msra.mxu0 %v209
    %228 = vmatprep.subr.bf16.mxu0 0
    %229 = vmatpush1.bf16.msra.mxu0 %v210
    %230 = vmatprep.subr.bf16.mxu0 0
    %231 = vmatpush1.bf16.msra.mxu0 %v211
    %232 = vmatprep.subr.bf16.mxu0 0
    %233 = vmatpush1.bf16.msra.mxu0 %v212
    %234 = vmatprep.subr.bf16.mxu0 0
    %235 = vmatpush1.bf16.msra.mxu0 %v213
    %236 = vmatprep.subr.bf16.mxu0 0
    %237 = vmatpush1.bf16.msra.mxu0 %v214
    %238 = vmatprep.subr.bf16.mxu0 0
    %239 = vmatpush1.bf16.msra.mxu0 %v215
    %240 = vmatprep.subr.bf16.mxu0 0
    %241 = vmatpush1.bf16.msra.mxu0 0
    %242 = vmatprep.subr.bf16.mxu0 0
    %243 = vmatpush1.bf16.msra.mxu0 0
    %244 = vmatprep.subr.bf16.mxu0 0
    %245 = vmatpush1.bf16.msra.mxu0 0
    %246 = vmatprep.subr.bf16.mxu0 0
    %247 = vmatpush1.bf16.msra.mxu0 0
    %248 = vmatprep.subr.bf16.mxu0 0
    %249 = vmatpush1.bf16.msra.mxu0 0
    %250 = vmatprep.subr.bf16.mxu0 0
    %251 = vmatpush1.bf16.msra.mxu0 0
    %252 = vmatprep.subr.bf16.mxu0 0
    %253 = vmatpush1.bf16.msra.mxu0 0
    %254 = vmatprep.subr.bf16.mxu0 0
    %255 = vmatpush1.bf16.msra.mxu0 0
    %256 = vmatprep.mubr.bf16.mxu0 0
    %257 = vmatmul.mubr.bf16.gmra.mrb[0].mxu0 %v160
    %v258 = vpop.f32.mrb[0].mxu0
    %v259 = vadd.f32 0.0, %v258
    %v260 = vpop.f32.mrb[0].mxu0
    %v261 = vpop.f32.mrb[0].mxu0
    %v262 = vadd.f32 0.0, %v261
    %v263 = vpop.f32.mrb[0].mxu0
    %264 = vmatprep.mubr.bf16.mxu0 0
    %265 = vmatmul.mubr.bf16.gmra.mrb[0].mxu0 %v161
    %v266 = vpop.f32.mrb[0].mxu0
    %v267 = vadd.f32 0.0, %v266
    %v268 = vpop.f32.mrb[0].mxu0
    %v269 = vpop.f32.mrb[0].mxu0
    %v270 = vadd.f32 0.0, %v269
    %v271 = vpop.f32.mrb[0].mxu0
    %272 = vmatprep.mubr.bf16.mxu0 0
    %273 = vmatmul.mubr.bf16.gmra.mrb[0].mxu0 %v162
    %v274 = vpop.f32.mrb[0].mxu0
    %v275 = vadd.f32 0.0, %v274
    %v276 = vpop.f32.mrb[0].mxu0
    %v277 = vpop.f32.mrb[0].mxu0
    %v278 = vadd.f32 0.0, %v277
    %v279 = vpop.f32.mrb[0].mxu0
    %280 = vmatprep.mubr.bf16.mxu0 0
    %281 = vmatmul.mubr.bf16.gmra.mrb[0].mxu0 %v163
    %v282 = vpop.f32.mrb[0].mxu0
    %v283 = vadd.f32 0.0, %v282
    %v284 = vpop.f32.mrb[0].mxu0
    %v285 = vpop.f32.mrb[0].mxu0
    %v286 = vadd.f32 0.0, %v285
    %v287 = vpop.f32.mrb[0].mxu0
    %288 = vmatprep.mubr.bf16.mxu0 0
    %289 = vmatmul.mubr.bf16.gmra.mrb[0].mxu0 %v164
    %v290 = vpop.f32.mrb[0].mxu0
    %v291 = vadd.f32 0.0, %v290
    %v292 = vpop.f32.mrb[0].mxu0
    %v293 = vpop.f32.mrb[0].mxu0
    %v294 = vadd.f32 0.0, %v293
    %v295 = vpop.f32.mrb[0].mxu0
    %296 = vmatprep.mubr.bf16.mxu0 0
    %297 = vmatmul.mubr.bf16.gmra.mrb[0].mxu0 %v165
    %v298 = vpop.f32.mrb[0].mxu0
    %v299 = vadd.f32 0.0, %v298
    %v300 = vpop.f32.mrb[0].mxu0
    %v301 = vpop.f32.mrb[0].mxu0
    %v302 = vadd.f32 0.0, %v301
    %v303 = vpop.f32.mrb[0].mxu0
    %304 = vmatprep.mubr.bf16.mxu0 0
    %305 = vmatmul.mubr.bf16.gmra.mrb[0].mxu0 %v166
    %v306 = vpop.f32.mrb[0].mxu0
    %v307 = vadd.f32 0.0, %v306
    %v308 = vpop.f32.mrb[0].mxu0
    %v309 = vpop.f32.mrb[0].mxu0
    %v310 = vadd.f32 0.0, %v309
    %v311 = vpop.f32.mrb[0].mxu0
    %312 = vmatprep.mubr.bf16.mxu0 0
    %313 = vmatmul.mubr.bf16.gmra.mrb[0].mxu0 %v167
    %v314 = vpop.f32.mrb[0].mxu0
    %v315 = vadd.f32 0.0, %v314
    %v316 = vpop.f32.mrb[0].mxu0
    %v317 = vpop.f32.mrb[0].mxu0
    %v318 = vadd.f32 0.0, %v317
    %v319 = vpop.f32.mrb[0].mxu0
    %320 = vdwg.mxu0
    %v321 = vadd.f32 %v96, %v259
    %v322 = vadd.f32 %v97, %v262
    %v323 = vadd.f32 %v98, %v267
    %v324 = vadd.f32 %v99, %v270
    %v325 = vadd.f32 %v100, %v275
    %v326 = vadd.f32 %v101, %v278
    %v327 = vadd.f32 %v102, %v283
    %v328 = vadd.f32 %v103, %v286
    %v329 = vadd.f32 %v104, %v291
    %v330 = vadd.f32 %v105, %v294
    %v331 = vadd.f32 %v106, %v299
    %v332 = vadd.f32 %v107, %v302
    %v333 = vadd.f32 %v108, %v307
    %v334 = vadd.f32 %v109, %v310
    %v335 = vadd.f32 %v110, %v315
    %v336 = vadd.f32 %v111, %v318
    %337 = vst [vmem:[#allocation2] sm:$0xff] %v321
    %338 = vst [vmem:[#allocation2 + $0x8] sm:$0xff] %v322
    %339 = vst [vmem:[#allocation2 + $0x10] sm:$0xff] %v323
    %340 = vst [vmem:[#allocation2 + $0x18] sm:$0xff] %v324
    %341 = vst [vmem:[#allocation2 + $0x20] sm:$0xff] %v325
    %342 = vst [vmem:[#allocation2 + $0x28] sm:$0xff] %v326
    %343 = vst [vmem:[#allocation2 + $0x30] sm:$0xff] %v327
    %344 = vst [vmem:[#allocation2 + $0x38] sm:$0xff] %v328
    %345 = vst [vmem:[#allocation2 + $0x40] sm:$0xff] %v329
    %346 = vst [vmem:[#allocation2 + $0x48] sm:$0xff] %v330
    %347 = vst [vmem:[#allocation2 + $0x50] sm:$0xff] %v331
    %348 = vst [vmem:[#allocation2 + $0x58] sm:$0xff] %v332
    %349 = vst [vmem:[#allocation2 + $0x60] sm:$0xff] %v333
    %350 = vst [vmem:[#allocation2 + $0x68] sm:$0xff] %v334
    %351 = vst [vmem:[#allocation2 + $0x70] sm:$0xff] %v335
    %352 = vst [vmem:[#allocation2 + $0x78] sm:$0xff] %v336
    // Predicated region
    $region30: #{gcn_forward.11} parent=1 // pred_check
      %p353 = pneg %p55
    $region31: #{gcn_forward.11} parent=1 // pred_check_branch
      %355 = sbr.rel (%p353) target = $region33
    $region32: #{gcn_forward.11} parent=1 // pred_region
      %v356 = vld [vmem:[#allocation2] sm:$0xff]
      %v357 = vld [vmem:[#allocation2 + $0x8] sm:$0xff]
      %v358 = vld [vmem:[#allocation2 + $0x10] sm:$0xff]
      %v359 = vld [vmem:[#allocation2 + $0x18] sm:$0xff]
      %v360 = vld [vmem:[#allocation2 + $0x20] sm:$0xff]
      %v361 = vld [vmem:[#allocation2 + $0x28] sm:$0xff]
      %v362 = vld [vmem:[#allocation2 + $0x30] sm:$0xff]
      %v363 = vld [vmem:[#allocation2 + $0x38] sm:$0xff]
      %v364 = vld [vmem:[#allocation2 + $0x40] sm:$0xff]
      %v365 = vld [vmem:[#allocation2 + $0x48] sm:$0xff]
      %v366 = vld [vmem:[#allocation2 + $0x50] sm:$0xff]
      %v367 = vld [vmem:[#allocation2 + $0x58] sm:$0xff]
      %v368 = vld [vmem:[#allocation2 + $0x60] sm:$0xff]
      %v369 = vld [vmem:[#allocation2 + $0x68] sm:$0xff]
      %v370 = vld [vmem:[#allocation2 + $0x70] sm:$0xff]
      %v371 = vld [vmem:[#allocation2 + $0x78] sm:$0xff]
      %v372 = vld [vmem:[#allocation8] sm:$0x1]
      %v374 = vlaneseq
      %v375 = vshrl.u32 %v374, 7
      %v376 = vsub.s32 0, %v375
      %v377 = vrot.slane %v372, %v376
      %v379 = vadd.f32 %v356, %v377
      %v380 = vadd.f32 %v357, %v377
      %v381 = vadd.f32 %v358, %v377
      %v382 = vadd.f32 %v359, %v377
      %v383 = vadd.f32 %v360, %v377
      %v384 = vadd.f32 %v361, %v377
      %v385 = vadd.f32 %v362, %v377
      %v386 = vadd.f32 %v363, %v377
      %v387 = vadd.f32 %v364, %v377
      %v388 = vadd.f32 %v365, %v377
      %v389 = vadd.f32 %v366, %v377
      %v390 = vadd.f32 %v367, %v377
      %v391 = vadd.f32 %v368, %v377
      %v392 = vadd.f32 %v369, %v377
      %v393 = vadd.f32 %v370, %v377
      %v394 = vadd.f32 %v371, %v377
      %v395 = vlaneseq
      %v396 = vand.u32 %v395, 127
      %vm397 = vcmp.lt.s32.totalorder %v396, 8
      %v398 = vsel %vm397, %v379, -inf
      %v399 = vsel %vm397, %v380, -inf
      %v400 = vsel %vm397, %v381, -inf
      %v401 = vsel %vm397, %v382, -inf
      %v402 = vsel %vm397, %v383, -inf
      %v403 = vsel %vm397, %v384, -inf
      %v404 = vsel %vm397, %v385, -inf
      %v405 = vsel %vm397, %v386, -inf
      %v406 = vsel %vm397, %v387, -inf
      %v407 = vsel %vm397, %v388, -inf
      %v408 = vsel %vm397, %v389, -inf
      %v409 = vsel %vm397, %v390, -inf
      %v410 = vsel %vm397, %v391, -inf
      %v411 = vsel %vm397, %v392, -inf
      %v412 = vsel %vm397, %v393, -inf
      %v413 = vsel %vm397, %v394, -inf
      %414 = vmax.xlane.f32.xlu0 %v398
      %v415 = vpop.xlane.xlu0 %414
      %416 = vmax.xlane.f32.xlu0 %v399
      %v417 = vpop.xlane.xlu0 %416
      %418 = vmax.xlane.f32.xlu0 %v400
      %v419 = vpop.xlane.xlu0 %418
      %420 = vmax.xlane.f32.xlu0 %v401
      %v421 = vpop.xlane.xlu0 %420
      %422 = vmax.xlane.f32.xlu0 %v402
      %v423 = vpop.xlane.xlu0 %422
      %424 = vmax.xlane.f32.xlu0 %v403
      %v425 = vpop.xlane.xlu0 %424
      %426 = vmax.xlane.f32.xlu0 %v404
      %v427 = vpop.xlane.xlu0 %426
      %428 = vmax.xlane.f32.xlu0 %v405
      %v429 = vpop.xlane.xlu0 %428
      %430 = vmax.xlane.f32.xlu0 %v406
      %v431 = vpop.xlane.xlu0 %430
      %432 = vmax.xlane.f32.xlu0 %v407
      %v433 = vpop.xlane.xlu0 %432
      %434 = vmax.xlane.f32.xlu0 %v408
      %v435 = vpop.xlane.xlu0 %434
      %436 = vmax.xlane.f32.xlu0 %v409
      %v437 = vpop.xlane.xlu0 %436
      %438 = vmax.xlane.f32.xlu0 %v410
      %v439 = vpop.xlane.xlu0 %438
      %440 = vmax.xlane.f32.xlu0 %v411
      %v441 = vpop.xlane.xlu0 %440
      %442 = vmax.xlane.f32.xlu0 %v412
      %v443 = vpop.xlane.xlu0 %442
      %444 = vmax.xlane.f32.xlu0 %v413
      %v445 = vpop.xlane.xlu0 %444
      %v446 = vsub.f32 %v398, %v415
      %v447 = vsub.f32 %v399, %v417
      %v448 = vsub.f32 %v400, %v419
      %v449 = vsub.f32 %v401, %v421
      %v450 = vsub.f32 %v402, %v423
      %v451 = vsub.f32 %v403, %v425
      %v452 = vsub.f32 %v404, %v427
      %v453 = vsub.f32 %v405, %v429
      %v454 = vsub.f32 %v406, %v431
      %v455 = vsub.f32 %v407, %v433
      %v456 = vsub.f32 %v408, %v435
      %v457 = vsub.f32 %v409, %v437
      %v458 = vsub.f32 %v410, %v439
      %v459 = vsub.f32 %v411, %v441
      %v460 = vsub.f32 %v412, %v443
      %v461 = vsub.f32 %v413, %v445
      %v462 = vmul.f32 %v446, 1.442695
      %v463 = vpow.pop %v462
      %v464 = vmul.f32 %v447, 1.442695
      %v465 = vpow.pop %v464
      %v466 = vmul.f32 %v448, 1.442695
      %v467 = vpow.pop %v466
      %v468 = vmul.f32 %v449, 1.442695
      %v469 = vpow.pop %v468
      %v470 = vmul.f32 %v450, 1.442695
      %v471 = vpow.pop %v470
      %v472 = vmul.f32 %v451, 1.442695
      %v473 = vpow.pop %v472
      %v474 = vmul.f32 %v452, 1.442695
      %v475 = vpow.pop %v474
      %v476 = vmul.f32 %v453, 1.442695
      %v477 = vpow.pop %v476
      %v478 = vmul.f32 %v454, 1.442695
      %v479 = vpow.pop %v478
      %v480 = vmul.f32 %v455, 1.442695
      %v481 = vpow.pop %v480
      %v482 = vmul.f32 %v456, 1.442695
      %v483 = vpow.pop %v482
      %v484 = vmul.f32 %v457, 1.442695
      %v485 = vpow.pop %v484
      %v486 = vmul.f32 %v458, 1.442695
      %v487 = vpow.pop %v486
      %v488 = vmul.f32 %v459, 1.442695
      %v489 = vpow.pop %v488
      %v490 = vmul.f32 %v460, 1.442695
      %v491 = vpow.pop %v490
      %v492 = vmul.f32 %v461, 1.442695
      %v493 = vpow.pop %v492
      %494 = vadd.xlane.f32.xlu0 %v463
      %v495 = vpop.xlane.xlu0 %494
      %496 = vadd.xlane.f32.xlu0 %v465
      %v497 = vpop.xlane.xlu0 %496
      %498 = vadd.xlane.f32.xlu0 %v467
      %v499 = vpop.xlane.xlu0 %498
      %500 = vadd.xlane.f32.xlu0 %v469
      %v501 = vpop.xlane.xlu0 %500
      %502 = vadd.xlane.f32.xlu0 %v471
      %v503 = vpop.xlane.xlu0 %502
      %504 = vadd.xlane.f32.xlu0 %v473
      %v505 = vpop.xlane.xlu0 %504
      %506 = vadd.xlane.f32.xlu0 %v475
      %v507 = vpop.xlane.xlu0 %506
      %508 = vadd.xlane.f32.xlu0 %v477
      %v509 = vpop.xlane.xlu0 %508
      %510 = vadd.xlane.f32.xlu0 %v479
      %v511 = vpop.xlane.xlu0 %510
      %512 = vadd.xlane.f32.xlu0 %v481
      %v513 = vpop.xlane.xlu0 %512
      %514 = vadd.xlane.f32.xlu0 %v483
      %v515 = vpop.xlane.xlu0 %514
      %516 = vadd.xlane.f32.xlu0 %v485
      %v517 = vpop.xlane.xlu0 %516
      %518 = vadd.xlane.f32.xlu0 %v487
      %v519 = vpop.xlane.xlu0 %518
      %520 = vadd.xlane.f32.xlu0 %v489
      %v521 = vpop.xlane.xlu0 %520
      %522 = vadd.xlane.f32.xlu0 %v491
      %v523 = vpop.xlane.xlu0 %522
      %524 = vadd.xlane.f32.xlu0 %v493
      %v525 = vpop.xlane.xlu0 %524
      %v526 = vlog2.pop %v495
      %v527 = vmul.f32 %v526, 0.6931472
      %v528 = vlog2.pop %v497
      %v529 = vmul.f32 %v528, 0.6931472
      %v530 = vlog2.pop %v499
      %v531 = vmul.f32 %v530, 0.6931472
      %v532 = vlog2.pop %v501
      %v533 = vmul.f32 %v532, 0.6931472
      %v534 = vlog2.pop %v503
      %v535 = vmul.f32 %v534, 0.6931472
      %v536 = vlog2.pop %v505
      %v537 = vmul.f32 %v536, 0.6931472
      %v538 = vlog2.pop %v507
      %v539 = vmul.f32 %v538, 0.6931472
      %v540 = vlog2.pop %v509
      %v541 = vmul.f32 %v540, 0.6931472
      %v542 = vlog2.pop %v511
      %v543 = vmul.f32 %v542, 0.6931472
      %v544 = vlog2.pop %v513
      %v545 = vmul.f32 %v544, 0.6931472
      %v546 = vlog2.pop %v515
      %v547 = vmul.f32 %v546, 0.6931472
      %v548 = vlog2.pop %v517
      %v549 = vmul.f32 %v548, 0.6931472
      %v550 = vlog2.pop %v519
      %v551 = vmul.f32 %v550, 0.6931472
      %v552 = vlog2.pop %v521
      %v553 = vmul.f32 %v552, 0.6931472
      %v554 = vlog2.pop %v523
      %v555 = vmul.f32 %v554, 0.6931472
      %v556 = vlog2.pop %v525
      %v557 = vmul.f32 %v556, 0.6931472
      %v558 = vsub.f32 %v446, %v527
      %v559 = vsub.f32 %v447, %v529
      %v560 = vsub.f32 %v448, %v531
      %v561 = vsub.f32 %v449, %v533
      %v562 = vsub.f32 %v450, %v535
      %v563 = vsub.f32 %v451, %v537
      %v564 = vsub.f32 %v452, %v539
      %v565 = vsub.f32 %v453, %v541
      %v566 = vsub.f32 %v454, %v543
      %v567 = vsub.f32 %v455, %v545
      %v568 = vsub.f32 %v456, %v547
      %v569 = vsub.f32 %v457, %v549
      %v570 = vsub.f32 %v458, %v551
      %v571 = vsub.f32 %v459, %v553
      %v572 = vsub.f32 %v460, %v555
      %v573 = vsub.f32 %v461, %v557
      %v574 = vsel %vm397, %v558, 0.0
      %v575 = vsel %vm397, %v559, 0.0
      %v576 = vsel %vm397, %v560, 0.0
      %v577 = vsel %vm397, %v561, 0.0
      %v578 = vsel %vm397, %v562, 0.0
      %v579 = vsel %vm397, %v563, 0.0
      %v580 = vsel %vm397, %v564, 0.0
      %v581 = vsel %vm397, %v565, 0.0
      %v582 = vsel %vm397, %v566, 0.0
      %v583 = vsel %vm397, %v567, 0.0
      %v584 = vsel %vm397, %v568, 0.0
      %v585 = vsel %vm397, %v569, 0.0
      %v586 = vsel %vm397, %v570, 0.0
      %v587 = vsel %vm397, %v571, 0.0
      %v588 = vsel %vm397, %v572, 0.0
      %v589 = vsel %vm397, %v573, 0.0
      %590 = vst [vmem:[#allocation9] sm:$0xff] %v574
      %591 = vst [vmem:[#allocation9 + $0x8] sm:$0xff] %v575
      %592 = vst [vmem:[#allocation9 + $0x10] sm:$0xff] %v576
      %593 = vst [vmem:[#allocation9 + $0x18] sm:$0xff] %v577
      %594 = vst [vmem:[#allocation9 + $0x20] sm:$0xff] %v578
      %595 = vst [vmem:[#allocation9 + $0x28] sm:$0xff] %v579
      %596 = vst [vmem:[#allocation9 + $0x30] sm:$0xff] %v580
      %597 = vst [vmem:[#allocation9 + $0x38] sm:$0xff] %v581
      %598 = vst [vmem:[#allocation9 + $0x40] sm:$0xff] %v582
      %599 = vst [vmem:[#allocation9 + $0x48] sm:$0xff] %v583
      %600 = vst [vmem:[#allocation9 + $0x50] sm:$0xff] %v584
      %601 = vst [vmem:[#allocation9 + $0x58] sm:$0xff] %v585
      %602 = vst [vmem:[#allocation9 + $0x60] sm:$0xff] %v586
      %603 = vst [vmem:[#allocation9 + $0x68] sm:$0xff] %v587
      %604 = vst [vmem:[#allocation9 + $0x70] sm:$0xff] %v588
      %605 = vst [vmem:[#allocation9 + $0x78] sm:$0xff] %v589
    $region33: #{gcn_forward.11} parent=1 // pred_fallthru
      _
    // Predicated region
    $region34: #{gcn_forward.11} parent=1 // pred_check
      _
    $region35: #{gcn_forward.11} parent=1 // pred_check_branch
      %607 = sbr.rel (0) target = $region37
    $region36: #{gcn_forward.11} parent=1 // pred_region
      %s609 = ssub.s32 2048, 2048
      %610 = vsyncadd [#allocation5], %s609
      %s611 = sshll.u32 [#allocation9], 4
      %s612 = int_to_ptr.vmem [resolvable:$true] %s611
      %617 = dma.vmem_to_hbm [thread:$0]  %s612, 2048, %s3, [#allocation5], 128, 128, 8
    $region37: #{gcn_forward.11} parent=1 // pred_fallthru
      _
    // Predicated region
    $region38: #{gcn_forward.11} parent=1 // pred_check
      _
    $region39: #{gcn_forward.11} parent=1 // pred_check_branch
      %619 = sbr.rel (0) target = $region41
    $region40: #{gcn_forward.11} parent=1 // pred_region
      %620 = dma.done [#allocation5], 2048
    $region41: #{gcn_forward.11} parent=1 // pred_fallthru
      _
    %621 = vsyncpa [#allocation4], 1
    %622 = vsyncpa [#allocation7], 1
    %623 = vsyncpa [#allocation5], 1

// kernel: gcn_forward.7
$region0: #{gcn_forward.7}
  #allocation0 [shape = 'u32[]', space=smem, size = 0x4, offset = 0x4, fixed_abs, tag = 'smem constant byte address 0x4 - core index']
  #allocation1 [shape = 'u32[144,128]{1,0:T(1,128)}', space=vmem, size = 0x12000, scoped, tag = 'internal scratch']
  #allocation2 [shape = 'f32[128,128]{1,0:T(8,128)}', space=vmem, size = 0x10000, scoped, tag = 'scratch operand']
  %s0 = inlined_call_operand.hbm [shape: bf16[128,128], index: 0, kind: input, shape index: {}]
  %s1 = inlined_call_operand.hbm [shape: bf16[128,128], index: 1, kind: input, shape index: {}]
  %s2 = inlined_call_operand.hbm [shape: f32[1,128], index: 2, kind: input, shape index: {}]
  %s3 = inlined_call_operand.hbm [shape: bf16[128,128], index: 3, kind: output, shape index: {}]
  %s4 = sld [smem:[#allocation0]]
  $region42: #{gcn_forward.7} parent=0
    _
  %s6 = ssub.s32 1, %s4
  %s7 = scalar_select 0, %s6, %s4
  $region1: #{gcn_forward.7} parent=0
    #allocation3 [shape = 'u8[32768]{0}', space=vmem, size = 0x8000, scoped, tag = 'input window, operand 0, single buffered']
    #allocation4 [shape = 's32[1]{0}', space=sflag, size = 0x4, scoped, tag = 'scoped memory for gcn_forward.7']
    #allocation5 [shape = 's32[1]{0}', space=sflag, size = 0x4, scoped, tag = 'scoped memory for gcn_forward.7']
    #allocation6 [shape = 'u8[32768]{0}', space=vmem, size = 0x8000, scoped, tag = 'input window, operand 1, single buffered']
    #allocation7 [shape = 's32[1]{0}', space=sflag, size = 0x4, scoped, tag = 'scoped memory for gcn_forward.7']
    #allocation8 [shape = 'u8[512]{0}', space=vmem, size = 0x400, scoped, tag = 'input window, operand 2, single buffered']
    #allocation9 [shape = 'u8[32768]{0}', space=vmem, size = 0x8000, scoped, tag = 'output window, operand 0, single buffered']
    %8 = vsyncpa [#allocation4], 0
    %9 = vsyncpa [#allocation7], 0
    %10 = vsyncpa [#allocation5], 0
    // Predicated region
    $region2: #{gcn_forward.7} parent=1 // pred_check
      _
    $region3: #{gcn_forward.7} parent=1 // pred_check_branch
      %12 = sbr.rel (0) target = $region5
    $region4: #{gcn_forward.7} parent=1 // pred_region
      %s14 = ssub.s32 1024, 1024
      %15 = vsyncadd [#allocation4], %s14
      %s16 = sshll.u32 [#allocation3], 4
      %s17 = int_to_ptr.vmem [resolvable:$true] %s16
      %22 = dma.hbm_to_vmem [thread:$0]  %s0, 1024, %s17, [#allocation4], 64, 64, 4
    $region5: #{gcn_forward.7} parent=1 // pred_fallthru
      _
    // Predicated region
    $region6: #{gcn_forward.7} parent=1 // pred_check
      _
    $region7: #{gcn_forward.7} parent=1 // pred_check_branch
      %24 = sbr.rel (0) target = $region9
    $region8: #{gcn_forward.7} parent=1 // pred_region
      %s26 = ssub.s32 1024, 1024
      %27 = vsyncadd [#allocation7], %s26
      %s28 = sshll.u32 [#allocation6], 4
      %s29 = int_to_ptr.vmem [resolvable:$true] %s28
      %34 = dma.hbm_to_vmem [thread:$0]  %s1, 1024, %s29, [#allocation7], 64, 64, 4
    $region9: #{gcn_forward.7} parent=1 // pred_fallthru
      _
    // Predicated region
    $region10: #{gcn_forward.7} parent=1 // pred_check
      _
    $region11: #{gcn_forward.7} parent=1 // pred_check_branch
      %36 = sbr.rel (0) target = $region13
    $region12: #{gcn_forward.7} parent=1 // pred_region
      %s38 = ssub.s32 16, 16
      %39 = vsyncadd [#allocation7], %s38
      %s41 = sshll.u32 [#allocation8], 4
      %s42 = int_to_ptr.vmem [resolvable:$true] %s41
      %44 = dma.hbm_to_vmem [thread:$0]  %s2, 16, %s42, [#allocation7]
    $region13: #{gcn_forward.7} parent=1 // pred_fallthru
      _
    // Predicated region
    $region14: #{gcn_forward.7} parent=1 // pred_check
      _
    $region15: #{gcn_forward.7} parent=1 // pred_check_branch
      %46 = sbr.rel (0) target = $region17
    $region16: #{gcn_forward.7} parent=1 // pred_region
      %47 = dma.done [#allocation4], 1024
    $region17: #{gcn_forward.7} parent=1 // pred_fallthru
      _
    // Predicated region
    $region18: #{gcn_forward.7} parent=1 // pred_check
      _
    $region19: #{gcn_forward.7} parent=1 // pred_check_branch
      %49 = sbr.rel (0) target = $region21
    $region20: #{gcn_forward.7} parent=1 // pred_region
      %50 = dma.done [#allocation7], 1024
    $region21: #{gcn_forward.7} parent=1 // pred_fallthru
      _
    // Predicated region
    $region22: #{gcn_forward.7} parent=1 // pred_check
      _
    $region23: #{gcn_forward.7} parent=1 // pred_check_branch
      %52 = sbr.rel (0) target = $region25
    $region24: #{gcn_forward.7} parent=1 // pred_region
      %53 = dma.done [#allocation7], 16
    $region25: #{gcn_forward.7} parent=1 // pred_fallthru
      _
    %p55 = scmp.eq.s32.totalorder 0, 0
    // Predicated region
    $region26: #{gcn_forward.7} parent=1 // pred_check
      %p56 = pneg %p55
    $region27: #{gcn_forward.7} parent=1 // pred_check_branch
      %58 = sbr.rel (%p56) target = $region29
    $region28: #{gcn_forward.7} parent=1 // pred_region
      %59 = vst [vmem:[#allocation2] sm:$0xff] 0.0
      %60 = vst [vmem:[#allocation2 + $0x8] sm:$0xff] 0.0
      %61 = vst [vmem:[#allocation2 + $0x10] sm:$0xff] 0.0
      %62 = vst [vmem:[#allocation2 + $0x18] sm:$0xff] 0.0
      %63 = vst [vmem:[#allocation2 + $0x20] sm:$0xff] 0.0
      %64 = vst [vmem:[#allocation2 + $0x28] sm:$0xff] 0.0
      %65 = vst [vmem:[#allocation2 + $0x30] sm:$0xff] 0.0
      %66 = vst [vmem:[#allocation2 + $0x38] sm:$0xff] 0.0
      %67 = vst [vmem:[#allocation2 + $0x40] sm:$0xff] 0.0
      %68 = vst [vmem:[#allocation2 + $0x48] sm:$0xff] 0.0
      %69 = vst [vmem:[#allocation2 + $0x50] sm:$0xff] 0.0
      %70 = vst [vmem:[#allocation2 + $0x58] sm:$0xff] 0.0
      %71 = vst [vmem:[#allocation2 + $0x60] sm:$0xff] 0.0
      %72 = vst [vmem:[#allocation2 + $0x68] sm:$0xff] 0.0
      %73 = vst [vmem:[#allocation2 + $0x70] sm:$0xff] 0.0
      %74 = vst [vmem:[#allocation2 + $0x78] sm:$0xff] 0.0
    $region29: #{gcn_forward.7} parent=1 // pred_fallthru
      _
    %s75 = smul.u32 0, 128
    %s76 = sshra.s32 %s75, 3
    %s77 = sand.u32 %s75, 7
    %s78 = smul.addr %s76, 4
    %s79 = scalar_lea.vmem [#allocation6], %s78
    %v80 = vld [vmem:[%s79] sm:$0xf]
    %v81 = vld [vmem:[%s79 + $0x4] sm:$0xf]
    %v82 = vld [vmem:[%s79 + $0x8] sm:$0xf]
    %v83 = vld [vmem:[%s79 + $0xc] sm:$0xf]
    %v84 = vld [vmem:[%s79 + $0x10] sm:$0xf]
    %v85 = vld [vmem:[%s79 + $0x14] sm:$0xf]
    %v86 = vld [vmem:[%s79 + $0x18] sm:$0xf]
    %v87 = vld [vmem:[%s79 + $0x1c] sm:$0xf]
    %v88 = vld [vmem:[%s79 + $0x20] sm:$0xf]
    %v89 = vld [vmem:[%s79 + $0x24] sm:$0xf]
    %v90 = vld [vmem:[%s79 + $0x28] sm:$0xf]
    %v91 = vld [vmem:[%s79 + $0x2c] sm:$0xf]
    %v92 = vld [vmem:[%s79 + $0x30] sm:$0xf]
    %v93 = vld [vmem:[%s79 + $0x34] sm:$0xf]
    %v94 = vld [vmem:[%s79 + $0x38] sm:$0xf]
    %v95 = vld [vmem:[%s79 + $0x3c] sm:$0xf]
    %v96 = vld [vmem:[#allocation2] sm:$0xff]
    %v97 = vld [vmem:[#allocation2 + $0x8] sm:$0xff]
    %v98 = vld [vmem:[#allocation2 + $0x10] sm:$0xff]
    %v99 = vld [vmem:[#allocation2 + $0x18] sm:$0xff]
    %v100 = vld [vmem:[#allocation2 + $0x20] sm:$0xff]
    %v101 = vld [vmem:[#allocation2 + $0x28] sm:$0xff]
    %v102 = vld [vmem:[#allocation2 + $0x30] sm:$0xff]
    %v103 = vld [vmem:[#allocation2 + $0x38] sm:$0xff]
    %v104 = vld [vmem:[#allocation2 + $0x40] sm:$0xff]
    %v105 = vld [vmem:[#allocation2 + $0x48] sm:$0xff]
    %v106 = vld [vmem:[#allocation2 + $0x50] sm:$0xff]
    %v107 = vld [vmem:[#allocation2 + $0x58] sm:$0xff]
    %v108 = vld [vmem:[#allocation2 + $0x60] sm:$0xff]
    %v109 = vld [vmem:[#allocation2 + $0x68] sm:$0xff]
    %v110 = vld [vmem:[#allocation2 + $0x70] sm:$0xff]
    %v111 = vld [vmem:[#allocation2 + $0x78] sm:$0xff]
    %v112 = vld [vmem:[#allocation3] sm:$0xf]
    %v113 = vld [vmem:[#allocation3 + $0x4] sm:$0xf]
    %v114 = vld [vmem:[#allocation3 + $0x8] sm:$0xf]
    %v115 = vld [vmem:[#allocation3 + $0xc] sm:$0xf]
    %v116 = vld [vmem:[#allocation3 + $0x10] sm:$0xf]
    %v117 = vld [vmem:[#allocation3 + $0x14] sm:$0xf]
    %v118 = vld [vmem:[#allocation3 + $0x18] sm:$0xf]
    %v119 = vld [vmem:[#allocation3 + $0x1c] sm:$0xf]
    %v120 = vld [vmem:[#allocation3 + $0x20] sm:$0xf]
    %v121 = vld [vmem:[#allocation3 + $0x24] sm:$0xf]
    %v122 = vld [vmem:[#allocation3 + $0x28] sm:$0xf]
    %v123 = vld [vmem:[#allocation3 + $0x2c] sm:$0xf]
    %v124 = vld [vmem:[#allocation3 + $0x30] sm:$0xf]
    %v125 = vld [vmem:[#allocation3 + $0x34] sm:$0xf]
    %v126 = vld [vmem:[#allocation3 + $0x38] sm:$0xf]
    %v127 = vld [vmem:[#allocation3 + $0x3c] sm:$0xf]
    %v144 = vunpack.c.l.b16 %v112
    %v145 = vunpack.c.l.b16 %v113
    %v146 = vunpack.c.l.b16 %v114
    %v147 = vunpack.c.l.b16 %v115
    %v148 = vunpack.c.l.b16 %v116
    %v149 = vunpack.c.l.b16 %v117
    %v150 = vunpack.c.l.b16 %v118
    %v151 = vunpack.c.l.b16 %v119
    %v152 = vunpack.c.l.b16 %v120
    %v153 = vunpack.c.l.b16 %v121
    %v154 = vunpack.c.l.b16 %v122
    %v155 = vunpack.c.l.b16 %v123
    %v156 = vunpack.c.l.b16 %v124
    %v157 = vunpack.c.l.b16 %v125
    %v158 = vunpack.c.l.b16 %v126
    %v159 = vunpack.c.l.b16 %v127
    %v160 = vpack.c.b16 %v145, %v144
    %v161 = vpack.c.b16 %v147, %v146
    %v162 = vpack.c.b16 %v149, %v148
    %v163 = vpack.c.b16 %v151, %v150
    %v164 = vpack.c.b16 %v153, %v152
    %v165 = vpack.c.b16 %v155, %v154
    %v166 = vpack.c.b16 %v157, %v156
    %v167 = vpack.c.b16 %v159, %v158
    %v192 = vunpack.c.l.b16 %v80
    %v193 = vunpack.c.l.b16 %v81
    %v194 = vunpack.c.l.b16 %v82
    %v195 = vunpack.c.l.b16 %v83
    %v196 = vunpack.c.l.b16 %v84
    %v197 = vunpack.c.l.b16 %v85
    %v198 = vunpack.c.l.b16 %v86
    %v199 = vunpack.c.l.b16 %v87
    %v200 = vunpack.c.l.b16 %v88
    %v201 = vunpack.c.l.b16 %v89
    %v202 = vunpack.c.l.b16 %v90
    %v203 = vunpack.c.l.b16 %v91
    %v204 = vunpack.c.l.b16 %v92
    %v205 = vunpack.c.l.b16 %v93
    %v206 = vunpack.c.l.b16 %v94
    %v207 = vunpack.c.l.b16 %v95
    %v208 = vpack.c.b16 %v193, %v192
    %v209 = vpack.c.b16 %v195, %v194
    %v210 = vpack.c.b16 %v197, %v196
    %v211 = vpack.c.b16 %v199, %v198
    %v212 = vpack.c.b16 %v201, %v200
    %v213 = vpack.c.b16 %v203, %v202
    %v214 = vpack.c.b16 %v205, %v204
    %v215 = vpack.c.b16 %v207, %v206
    %224 = vmatprep.subr.bf16.mxu0 0
    %225 = vmatpush1.bf16.msra.mxu0 %v208
    %226 = vmatprep.subr.bf16.mxu0 0
    %227 = vmatpush1.bf16.msra.mxu0 %v209
    %228 = vmatprep.subr.bf16.mxu0 0
    %229 = vmatpush1.bf16.msra.mxu0 %v210
    %230 = vmatprep.subr.bf16.mxu0 0
    %231 = vmatpush1.bf16.msra.mxu0 %v211
    %232 = vmatprep.subr.bf16.mxu0 0
    %233 = vmatpush1.bf16.msra.mxu0 %v212
    %234 = vmatprep.subr.bf16.mxu0 0
    %235 = vmatpush1.bf16.msra.mxu0 %v213
    %236 = vmatprep.subr.bf16.mxu0 0
    %237 = vmatpush1.bf16.msra.mxu0 %v214
    %238 = vmatprep.subr.bf16.mxu0 0
    %239 = vmatpush1.bf16.msra.mxu0 %v215
    %240 = vmatprep.subr.bf16.mxu0 0
    %241 = vmatpush1.bf16.msra.mxu0 0
    %242 = vmatprep.subr.bf16.mxu0 0
    %243 = vmatpush1.bf16.msra.mxu0 0
    %244 = vmatprep.subr.bf16.mxu0 0
    %245 = vmatpush1.bf16.msra.mxu0 0
    %246 = vmatprep.subr.bf16.mxu0 0
    %247 = vmatpush1.bf16.msra.mxu0 0
    %248 = vmatprep.subr.bf16.mxu0 0
    %249 = vmatpush1.bf16.msra.mxu0 0
    %250 = vmatprep.subr.bf16.mxu0 0
    %251 = vmatpush1.bf16.msra.mxu0 0
    %252 = vmatprep.subr.bf16.mxu0 0
    %253 = vmatpush1.bf16.msra.mxu0 0
    %254 = vmatprep.subr.bf16.mxu0 0
    %255 = vmatpush1.bf16.msra.mxu0 0
    %256 = vmatprep.mubr.bf16.mxu0 0
    %257 = vmatmul.mubr.bf16.gmra.mrb[0].mxu0 %v160
    %v258 = vpop.f32.mrb[0].mxu0
    %v259 = vadd.f32 0.0, %v258
    %v260 = vpop.f32.mrb[0].mxu0
    %v261 = vpop.f32.mrb[0].mxu0
    %v262 = vadd.f32 0.0, %v261
    %v263 = vpop.f32.mrb[0].mxu0
    %264 = vmatprep.mubr.bf16.mxu0 0
    %265 = vmatmul.mubr.bf16.gmra.mrb[0].mxu0 %v161
    %v266 = vpop.f32.mrb[0].mxu0
    %v267 = vadd.f32 0.0, %v266
    %v268 = vpop.f32.mrb[0].mxu0
    %v269 = vpop.f32.mrb[0].mxu0
    %v270 = vadd.f32 0.0, %v269
    %v271 = vpop.f32.mrb[0].mxu0
    %272 = vmatprep.mubr.bf16.mxu0 0
    %273 = vmatmul.mubr.bf16.gmra.mrb[0].mxu0 %v162
    %v274 = vpop.f32.mrb[0].mxu0
    %v275 = vadd.f32 0.0, %v274
    %v276 = vpop.f32.mrb[0].mxu0
    %v277 = vpop.f32.mrb[0].mxu0
    %v278 = vadd.f32 0.0, %v277
    %v279 = vpop.f32.mrb[0].mxu0
    %280 = vmatprep.mubr.bf16.mxu0 0
    %281 = vmatmul.mubr.bf16.gmra.mrb[0].mxu0 %v163
    %v282 = vpop.f32.mrb[0].mxu0
    %v283 = vadd.f32 0.0, %v282
    %v284 = vpop.f32.mrb[0].mxu0
    %v285 = vpop.f32.mrb[0].mxu0
    %v286 = vadd.f32 0.0, %v285
    %v287 = vpop.f32.mrb[0].mxu0
    %288 = vmatprep.mubr.bf16.mxu0 0
    %289 = vmatmul.mubr.bf16.gmra.mrb[0].mxu0 %v164
    %v290 = vpop.f32.mrb[0].mxu0
    %v291 = vadd.f32 0.0, %v290
    %v292 = vpop.f32.mrb[0].mxu0
    %v293 = vpop.f32.mrb[0].mxu0
    %v294 = vadd.f32 0.0, %v293
    %v295 = vpop.f32.mrb[0].mxu0
    %296 = vmatprep.mubr.bf16.mxu0 0
    %297 = vmatmul.mubr.bf16.gmra.mrb[0].mxu0 %v165
    %v298 = vpop.f32.mrb[0].mxu0
    %v299 = vadd.f32 0.0, %v298
    %v300 = vpop.f32.mrb[0].mxu0
    %v301 = vpop.f32.mrb[0].mxu0
    %v302 = vadd.f32 0.0, %v301
    %v303 = vpop.f32.mrb[0].mxu0
    %304 = vmatprep.mubr.bf16.mxu0 0
    %305 = vmatmul.mubr.bf16.gmra.mrb[0].mxu0 %v166
    %v306 = vpop.f32.mrb[0].mxu0
    %v307 = vadd.f32 0.0, %v306
    %v308 = vpop.f32.mrb[0].mxu0
    %v309 = vpop.f32.mrb[0].mxu0
    %v310 = vadd.f32 0.0, %v309
    %v311 = vpop.f32.mrb[0].mxu0
    %312 = vmatprep.mubr.bf16.mxu0 0
    %313 = vmatmul.mubr.bf16.gmra.mrb[0].mxu0 %v167
    %v314 = vpop.f32.mrb[0].mxu0
    %v315 = vadd.f32 0.0, %v314
    %v316 = vpop.f32.mrb[0].mxu0
    %v317 = vpop.f32.mrb[0].mxu0
    %v318 = vadd.f32 0.0, %v317
    %v319 = vpop.f32.mrb[0].mxu0
    %320 = vdwg.mxu0
    %v321 = vadd.f32 %v96, %v259
    %v322 = vadd.f32 %v97, %v262
    %v323 = vadd.f32 %v98, %v267
    %v324 = vadd.f32 %v99, %v270
    %v325 = vadd.f32 %v100, %v275
    %v326 = vadd.f32 %v101, %v278
    %v327 = vadd.f32 %v102, %v283
    %v328 = vadd.f32 %v103, %v286
    %v329 = vadd.f32 %v104, %v291
    %v330 = vadd.f32 %v105, %v294
    %v331 = vadd.f32 %v106, %v299
    %v332 = vadd.f32 %v107, %v302
    %v333 = vadd.f32 %v108, %v307
    %v334 = vadd.f32 %v109, %v310
    %v335 = vadd.f32 %v110, %v315
    %v336 = vadd.f32 %v111, %v318
    %337 = vst [vmem:[#allocation2] sm:$0xff] %v321
    %338 = vst [vmem:[#allocation2 + $0x8] sm:$0xff] %v322
    %339 = vst [vmem:[#allocation2 + $0x10] sm:$0xff] %v323
    %340 = vst [vmem:[#allocation2 + $0x18] sm:$0xff] %v324
    %341 = vst [vmem:[#allocation2 + $0x20] sm:$0xff] %v325
    %342 = vst [vmem:[#allocation2 + $0x28] sm:$0xff] %v326
    %343 = vst [vmem:[#allocation2 + $0x30] sm:$0xff] %v327
    %344 = vst [vmem:[#allocation2 + $0x38] sm:$0xff] %v328
    %345 = vst [vmem:[#allocation2 + $0x40] sm:$0xff] %v329
    %346 = vst [vmem:[#allocation2 + $0x48] sm:$0xff] %v330
    %347 = vst [vmem:[#allocation2 + $0x50] sm:$0xff] %v331
    %348 = vst [vmem:[#allocation2 + $0x58] sm:$0xff] %v332
    %349 = vst [vmem:[#allocation2 + $0x60] sm:$0xff] %v333
    %350 = vst [vmem:[#allocation2 + $0x68] sm:$0xff] %v334
    %351 = vst [vmem:[#allocation2 + $0x70] sm:$0xff] %v335
    %352 = vst [vmem:[#allocation2 + $0x78] sm:$0xff] %v336
    // Predicated region
    $region30: #{gcn_forward.7} parent=1 // pred_check
      %p353 = pneg %p55
    $region31: #{gcn_forward.7} parent=1 // pred_check_branch
      %355 = sbr.rel (%p353) target = $region33
    $region32: #{gcn_forward.7} parent=1 // pred_region
      %v356 = vld [vmem:[#allocation2] sm:$0xff]
      %v357 = vld [vmem:[#allocation2 + $0x8] sm:$0xff]
      %v358 = vld [vmem:[#allocation2 + $0x10] sm:$0xff]
      %v359 = vld [vmem:[#allocation2 + $0x18] sm:$0xff]
      %v360 = vld [vmem:[#allocation2 + $0x20] sm:$0xff]
      %v361 = vld [vmem:[#allocation2 + $0x28] sm:$0xff]
      %v362 = vld [vmem:[#allocation2 + $0x30] sm:$0xff]
      %v363 = vld [vmem:[#allocation2 + $0x38] sm:$0xff]
      %v364 = vld [vmem:[#allocation2 + $0x40] sm:$0xff]
      %v365 = vld [vmem:[#allocation2 + $0x48] sm:$0xff]
      %v366 = vld [vmem:[#allocation2 + $0x50] sm:$0xff]
      %v367 = vld [vmem:[#allocation2 + $0x58] sm:$0xff]
      %v368 = vld [vmem:[#allocation2 + $0x60] sm:$0xff]
      %v369 = vld [vmem:[#allocation2 + $0x68] sm:$0xff]
      %v370 = vld [vmem:[#allocation2 + $0x70] sm:$0xff]
      %v371 = vld [vmem:[#allocation2 + $0x78] sm:$0xff]
      %v372 = vld [vmem:[#allocation8] sm:$0x1]
      %v374 = vlaneseq
      %v375 = vshrl.u32 %v374, 7
      %v376 = vsub.s32 0, %v375
      %v377 = vrot.slane %v372, %v376
      %v379 = vadd.f32 %v356, %v377
      %v380 = vadd.f32 %v357, %v377
      %v381 = vadd.f32 %v358, %v377
      %v382 = vadd.f32 %v359, %v377
      %v383 = vadd.f32 %v360, %v377
      %v384 = vadd.f32 %v361, %v377
      %v385 = vadd.f32 %v362, %v377
      %v386 = vadd.f32 %v363, %v377
      %v387 = vadd.f32 %v364, %v377
      %v388 = vadd.f32 %v365, %v377
      %v389 = vadd.f32 %v366, %v377
      %v390 = vadd.f32 %v367, %v377
      %v391 = vadd.f32 %v368, %v377
      %v392 = vadd.f32 %v369, %v377
      %v393 = vadd.f32 %v370, %v377
      %v394 = vadd.f32 %v371, %v377
      %v395 = vmax.f32 %v379, 0.0
      %v396 = vmax.f32 %v380, 0.0
      %v397 = vmax.f32 %v381, 0.0
      %v398 = vmax.f32 %v382, 0.0
      %v399 = vmax.f32 %v383, 0.0
      %v400 = vmax.f32 %v384, 0.0
      %v401 = vmax.f32 %v385, 0.0
      %v402 = vmax.f32 %v386, 0.0
      %v403 = vmax.f32 %v387, 0.0
      %v404 = vmax.f32 %v388, 0.0
      %v405 = vmax.f32 %v389, 0.0
      %v406 = vmax.f32 %v390, 0.0
      %v407 = vmax.f32 %v391, 0.0
      %v408 = vmax.f32 %v392, 0.0
      %v409 = vmax.f32 %v393, 0.0
      %v410 = vmax.f32 %v394, 0.0
      %v411 = vpack.c.bf16 %v396, %v395
      %v412 = vpack.c.bf16 %v398, %v397
      %v413 = vpack.c.bf16 %v400, %v399
      %v414 = vpack.c.bf16 %v402, %v401
      %v415 = vpack.c.bf16 %v404, %v403
      %v416 = vpack.c.bf16 %v406, %v405
      %v417 = vpack.c.bf16 %v408, %v407
      %v418 = vpack.c.bf16 %v410, %v409
      %v427 = vunpack.c.l.b16 %v411
      %v428 = vunpack.c.h.b16 %v411
      %v429 = vunpack.c.l.b16 %v412
      %v430 = vunpack.c.h.b16 %v412
      %v431 = vunpack.c.l.b16 %v413
      %v432 = vunpack.c.h.b16 %v413
      %v433 = vunpack.c.l.b16 %v414
      %v434 = vunpack.c.h.b16 %v414
      %v435 = vunpack.c.l.b16 %v415
      %v436 = vunpack.c.h.b16 %v415
      %v437 = vunpack.c.l.b16 %v416
      %v438 = vunpack.c.h.b16 %v416
      %v439 = vunpack.c.l.b16 %v417
      %v440 = vunpack.c.h.b16 %v417
      %v441 = vunpack.c.l.b16 %v418
      %v442 = vunpack.c.h.b16 %v418
      %v443 = vpack.c.b16 %v427, %v427
      %v444 = vpack.c.b16 %v428, %v428
      %v445 = vpack.c.b16 %v429, %v429
      %v446 = vpack.c.b16 %v430, %v430
      %v447 = vpack.c.b16 %v431, %v431
      %v448 = vpack.c.b16 %v432, %v432
      %v449 = vpack.c.b16 %v433, %v433
      %v450 = vpack.c.b16 %v434, %v434
      %v451 = vpack.c.b16 %v435, %v435
      %v452 = vpack.c.b16 %v436, %v436
      %v453 = vpack.c.b16 %v437, %v437
      %v454 = vpack.c.b16 %v438, %v438
      %v455 = vpack.c.b16 %v439, %v439
      %v456 = vpack.c.b16 %v440, %v440
      %v457 = vpack.c.b16 %v441, %v441
      %v458 = vpack.c.b16 %v442, %v442
      %475 = vst [vmem:[#allocation9] sm:$0xf] %v443
      %476 = vst [vmem:[#allocation9 + $0x4] sm:$0xf] %v444
      %477 = vst [vmem:[#allocation9 + $0x8] sm:$0xf] %v445
      %478 = vst [vmem:[#allocation9 + $0xc] sm:$0xf] %v446
      %479 = vst [vmem:[#allocation9 + $0x10] sm:$0xf] %v447
      %480 = vst [vmem:[#allocation9 + $0x14] sm:$0xf] %v448
      %481 = vst [vmem:[#allocation9 + $0x18] sm:$0xf] %v449
      %482 = vst [vmem:[#allocation9 + $0x1c] sm:$0xf] %v450
      %483 = vst [vmem:[#allocation9 + $0x20] sm:$0xf] %v451
      %484 = vst [vmem:[#allocation9 + $0x24] sm:$0xf] %v452
      %485 = vst [vmem:[#allocation9 + $0x28] sm:$0xf] %v453
      %486 = vst [vmem:[#allocation9 + $0x2c] sm:$0xf] %v454
      %487 = vst [vmem:[#allocation9 + $0x30] sm:$0xf] %v455
      %488 = vst [vmem:[#allocation9 + $0x34] sm:$0xf] %v456
      %489 = vst [vmem:[#allocation9 + $0x38] sm:$0xf] %v457
      %490 = vst [vmem:[#allocation9 + $0x3c] sm:$0xf] %v458
    $region33: #{gcn_forward.7} parent=1 // pred_fallthru
      _
    // Predicated region
    $region34: #{gcn_forward.7} parent=1 // pred_check
      _
    $region35: #{gcn_forward.7} parent=1 // pred_check_branch
      %492 = sbr.rel (0) target = $region37
    $region36: #{gcn_forward.7} parent=1 // pred_region
      %s494 = ssub.s32 1024, 1024
      %495 = vsyncadd [#allocation5], %s494
      %s496 = sshll.u32 [#allocation9], 4
      %s497 = int_to_ptr.vmem [resolvable:$true] %s496
      %502 = dma.vmem_to_hbm [thread:$0]  %s497, 1024, %s3, [#allocation5], 64, 64, 4
    $region37: #{gcn_forward.7} parent=1 // pred_fallthru
      _
    // Predicated region
    $region38: #{gcn_forward.7} parent=1 // pred_check
      _
    $region39: #{gcn_forward.7} parent=1 // pred_check_branch
      %504 = sbr.rel (0) target = $region41
    $region40: #{gcn_forward.7} parent=1 // pred_region
      %505 = dma.done [#allocation5], 1024
    $region41: #{gcn_forward.7} parent=1 // pred_fallthru
      _
    %506 = vsyncpa [#allocation4], 1
    %507 = vsyncpa [#allocation7], 1
    %508 = vsyncpa [#allocation5], 1

</llo_original>
